<compile_context>
chip_gen: v7x
topology: tpu7x:2x2x1
jax: 0.10.0
libtpu: 0.0.40
codegen_flags: <defaults>
</compile_context>

<pallas_src>
import math

import jax
import jax.numpy as jnp
from jax.experimental import pallas as pl


# --------------------------------------------------------------------------
# Fused kernel: n_ptr attentions + residual + LayerNorm + cls MLP + concat
# --------------------------------------------------------------------------
def _make_fused_kernel(n_ptr, B, Sq, D, V, sk_list):
    def kernel(*refs):
        it = iter(refs)
        x_ref = next(it)
        qmask_ref = next(it)
        ptr_refs = [next(it) for _ in range(n_ptr)]
        kmask_refs = [next(it) for _ in range(n_ptr)]
        wq_ref = next(it)                 # (D, n_ptr*D), 1/sqrt(D) pre-folded
        bq_ref = next(it)                 # (1, n_ptr*D)
        wkv_refs = [next(it) for _ in range(n_ptr)]   # (D, 2D) each
        bkv_refs = [next(it) for _ in range(n_ptr)]   # (1, 2D) each
        gamma_ref = next(it)
        beta_ref = next(it)
        w1_ref = next(it)
        b1_ref = next(it)
        w2_ref = next(it)
        b2_ref = next(it)
        out_ref = next(it)

        x = x_ref[...]                                  # (B, Sq, D)
        xf = x.reshape(B * Sq, D)
        qm = qmask_ref[...]                             # (B, Sq)

        # All Q projections in one matmul (scale folded into wq/bq on host).
        q_all = (jnp.dot(xf, wq_ref[...], preferred_element_type=jnp.float32)
                 + bq_ref[0]).reshape(B, Sq, n_ptr * D)

        a_sum = jnp.zeros((B, Sq, D), jnp.float32)
        scores = []
        for i in range(n_ptr):
            sk = sk_list[i]
            pf = ptr_refs[i][...].reshape(B * sk, D)
            kv = (jnp.dot(pf, wkv_refs[i][...],
                          preferred_element_type=jnp.float32)
                  + bkv_refs[i][0])                     # (B*Sk, 2D)
            k = kv[:, :D].reshape(B, sk, D)
            v = kv[:, D:].reshape(B, sk, D)
            q = q_all[:, :, i * D:(i + 1) * D]          # (B, Sq, D)

            # batched q @ k^T without an explicit transpose
            e = jnp.einsum('bqd,bkd->bqk', q, k,
                           preferred_element_type=jnp.float32)  # (B, Sq, Sk)
            km = kmask_refs[i][...]                     # (B, Sk)
            e = jnp.where(km[:, None, :] > 0, e, jnp.float32(-1e9))

            attn = jax.nn.softmax(e, axis=-1)   # attn dropout = identity (eval)
            a_sum = a_sum + jnp.einsum('bqk,bkd->bqd', attn, v,
                                       preferred_element_type=jnp.float32)
            scores.append(e)

        # q_mask zeroes padded query rows; it distributes over the sum.
        c = x + a_sum * qm[:, :, None]

        # LayerNorm + cls_predicator on flattened rows (dropouts = identity).
        cf = c.reshape(B * Sq, D)
        mean = jnp.mean(cf, axis=-1, keepdims=True)
        var = jnp.mean((cf - mean) ** 2, axis=-1, keepdims=True)
        cf = (cf - mean) * jax.lax.rsqrt(var + 1e-5)
        cf = cf * gamma_ref[0] + beta_ref[0]
        h = jnp.tanh(jnp.dot(cf, w1_ref[...],
                             preferred_element_type=jnp.float32) + b1_ref[0])
        cls = (jnp.dot(h, w2_ref[...], preferred_element_type=jnp.float32)
               + b2_ref[0]).reshape(B, Sq, V)

        # single lane-dense store of [cls | e_0 | e_1 | ...]
        out_ref[...] = jnp.concatenate([cls] + scores, axis=-1)

    return kernel


# --------------------------------------------------------------------------
# Module wrapper (host-side weight packing + pallas_call)
# --------------------------------------------------------------------------
def pointer_predicator_forward(x, mask, pointers, attn_params, ln_params,
                               cls_params, vocab_size):
    B, Sq, D = x.shape
    n_ptr = len(pointers)
    V = vocab_size
    sk_list = [ptr.shape[1] for ptr, _ in pointers]
    total = V + sum(sk_list)

    inv_sqrt_d = jnp.float32(1.0 / math.sqrt(D))
    # concat Q weights across pointers; fold the 1/sqrt(D) score scale in
    wq_all = jnp.concatenate([p[0] for p in attn_params], axis=1) * inv_sqrt_d
    bq_all = (jnp.concatenate([p[1] for p in attn_params], axis=0)
              * inv_sqrt_d).reshape(1, n_ptr * D)
    # per-pointer fused K|V weights
    wkv = [jnp.concatenate([p[2], p[4]], axis=1) for p in attn_params]
    bkv = [jnp.concatenate([p[3], p[5]], axis=0).reshape(1, 2 * D)
           for p in attn_params]

    gamma, beta = ln_params
    w1, b1, w2, b2 = cls_params

    operands = ([x.astype(jnp.float32), mask.astype(jnp.float32)]
                + [p.astype(jnp.float32) for p, _ in pointers]
                + [m.astype(jnp.float32) for _, m in pointers]
                + [wq_all, bq_all] + wkv + bkv
                + [gamma.reshape(1, D), beta.reshape(1, D),
                   w1, b1.reshape(1, D), w2, b2.reshape(1, V)])

    kernel = _make_fused_kernel(n_ptr, B, Sq, D, V, sk_list)
    # No grid: whole problem is one block resident in VMEM (default specs).
    y_prob = pl.pallas_call(
        kernel,
        out_shape=jax.ShapeDtypeStruct((B, Sq, total), jnp.float32),
    )(*operands)

    cls_mask = jnp.ones((B, V), dtype=jnp.int32)
    y_prob_mask = jnp.concatenate(
        [cls_mask] + [m.astype(jnp.int32) for _, m in pointers], axis=-1)
    return y_prob, y_prob_mask


# --------------------------------------------------------------------------
# Pure-JAX reference for correctness checking
# --------------------------------------------------------------------------
def _reference_forward(x, mask, pointers, attn_params, ln_params, cls_params,
                       vocab_size):
    B, Sq, D = x.shape
    a_sum = jnp.zeros_like(x)
    ptr_scores = []
    for (ptr, ptr_mask), (wq, bq, wk, bk, wv, bv) in zip(pointers, attn_params):
        q = x @ wq + bq
        k = ptr @ wk + bk
        v = ptr @ wv + bv
        e = jnp.einsum("bsd,btd->bst", q, k) / math.sqrt(D)
        e = jnp.where(ptr_mask[:, None, :] > 0, e, -1e9)
        a = jnp.einsum("bst,btd->bsd", jax.nn.softmax(e, -1), v)
        a = a * mask[:, :, None].astype(jnp.float32)
        a_sum = a_sum + a
        ptr_scores.append(e)
    c = x + a_sum
    mean = jnp.mean(c, -1, keepdims=True)
    var = jnp.mean((c - mean) ** 2, -1, keepdims=True)
    gamma, beta = ln_params
    c = (c - mean) * jax.lax.rsqrt(var + 1e-5) * gamma + beta
    w1, b1, w2, b2 = cls_params
    cls_score = jnp.tanh(c @ w1 + b1) @ w2 + b2
    y_prob = jnp.concatenate([cls_score] + ptr_scores, axis=-1)
    cls_mask = jnp.ones((B, vocab_size), dtype=jnp.int32)
    y_prob_mask = jnp.concatenate(
        [cls_mask] + [m.astype(jnp.int32) for _, m in pointers], axis=-1)
    return y_prob, y_prob_mask


if __name__ == "__main__":
    B, Sq, D, V = 2, 8, 32, 16        # batch, seq, d_hidden, vocab_size
    ptr_lens = [8, 16]                # two pointer sources

    key = jax.random.PRNGKey(0)
    ks = iter(jax.random.split(key, 64))

    def rnd(shape, scale=0.05):
        return (scale * jax.random.normal(next(ks), shape)).astype(jnp.float32)

    x = rnd((B, Sq, D), 1.0)
    mask = jnp.concatenate(
        [jnp.ones((B, Sq - 2), jnp.int32), jnp.zeros((B, 2), jnp.int32)], -1)

    pointers = []
    for L in ptr_lens:
        ptr = rnd((B, L, D), 1.0)
        pmask = jnp.concatenate(
            [jnp.ones((B, L - 1), jnp.int32), jnp.zeros((B, 1), jnp.int32)], -1)
        pointers.append((ptr, pmask))

    # ScaledDotAttention projection weights (Wq, bq, Wk, bk, Wv, bv) per pointer
    attn_params = [
        (rnd((D, D)), rnd((D,)), rnd((D, D)), rnd((D,)), rnd((D, D)), rnd((D,)))
        for _ in ptr_lens
    ]
    # LayerNorm (torch default init: weight=1, bias=0)
    ln_params = (jnp.ones((D,), jnp.float32), jnp.zeros((D,), jnp.float32))
    # cls_predicator: Linear(D,D) -> Tanh -> Linear(D,V)
    cls_params = (rnd((D, D)), rnd((D,)), rnd((D, V)), rnd((V,)))

    y_prob, y_mask = pointer_predicator_forward(
        x, mask, pointers, attn_params, ln_params, cls_params, V)
    jax.block_until_ready((y_prob, y_mask))

    y_ref, m_ref = _reference_forward(
        x, mask, pointers, attn_params, ln_params, cls_params, V)
    assert y_prob.shape == (B, Sq, V + sum(ptr_lens))
    assert y_mask.shape == (B, V + sum(ptr_lens))
    assert jnp.allclose(y_prob, y_ref, atol=1e-4, rtol=1e-4)
    assert jnp.array_equal(y_mask, m_ref)
    print("KERNEL_OK")
</pallas_src>

<mosaic_0001>
module attributes {stable_mosaic.version = 11 : i64} {
  func.func @kernel(%arg0: memref<2x8x32xf32, #tpu.memory_space<vmem>>, %arg1: memref<2x8xf32, #tpu.memory_space<vmem>>, %arg2: memref<2x8x32xf32, #tpu.memory_space<vmem>>, %arg3: memref<2x16x32xf32, #tpu.memory_space<vmem>>, %arg4: memref<2x8xf32, #tpu.memory_space<vmem>>, %arg5: memref<2x16xf32, #tpu.memory_space<vmem>>, %arg6: memref<32x64xf32, #tpu.memory_space<vmem>>, %arg7: memref<1x64xf32, #tpu.memory_space<vmem>>, %arg8: memref<32x64xf32, #tpu.memory_space<vmem>>, %arg9: memref<32x64xf32, #tpu.memory_space<vmem>>, %arg10: memref<1x64xf32, #tpu.memory_space<vmem>>, %arg11: memref<1x64xf32, #tpu.memory_space<vmem>>, %arg12: memref<1x32xf32, #tpu.memory_space<vmem>>, %arg13: memref<1x32xf32, #tpu.memory_space<vmem>>, %arg14: memref<32x32xf32, #tpu.memory_space<vmem>>, %arg15: memref<1x32xf32, #tpu.memory_space<vmem>>, %arg16: memref<32x16xf32, #tpu.memory_space<vmem>>, %arg17: memref<1x16xf32, #tpu.memory_space<vmem>>, %arg18: memref<2x8x40xf32, #tpu.memory_space<vmem>>) attributes {dimension_semantics = [], scalar_prefetch = 0 : i64, scratch_operands = 0 : i64, tpu.core_type = #tpu.core_type<tc>} {
    %c0 = arith.constant 0 : index
    %c0_0 = arith.constant 0 : index
    %c0_1 = arith.constant 0 : index
    %0 = vector.load %arg0[%c0, %c0_0, %c0_1] : memref<2x8x32xf32, #tpu.memory_space<vmem>>, vector<2x8x32xf32>
    %1 = vector.shape_cast %0 : vector<2x8x32xf32> to vector<16x32xf32>
    %c0_2 = arith.constant 0 : index
    %c0_3 = arith.constant 0 : index
    %2 = vector.load %arg1[%c0_2, %c0_3] : memref<2x8xf32, #tpu.memory_space<vmem>>, vector<2x8xf32>
    %c0_4 = arith.constant 0 : index
    %c0_5 = arith.constant 0 : index
    %3 = vector.load %arg6[%c0_4, %c0_5] : memref<32x64xf32, #tpu.memory_space<vmem>>, vector<32x64xf32>
    %cst = arith.constant dense<0.000000e+00> : vector<16x64xf32>
    %4 = tpu.matmul %1, %3, %cst {dimension_numbers = #tpu.dot_dimension_numbers<[1], [0], [0], [1], [0, 0, 1, 1], [], []>} : vector<16x32xf32>, vector<32x64xf32>, vector<16x64xf32> -> vector<16x64xf32>
    %c0_6 = arith.constant 0 : index
    %c0_7 = arith.constant 0 : index
    %5 = vector.load %arg7[%c0_6, %c0_7] : memref<1x64xf32, #tpu.memory_space<vmem>>, vector<1x64xf32>
    %6 = vector.shape_cast %5 : vector<1x64xf32> to vector<64xf32>
    %7 = vector.shape_cast %6 : vector<64xf32> to vector<1x64xf32>
    %8 = vector.broadcast %7 : vector<1x64xf32> to vector<16x64xf32>
    %9 = arith.addf %4, %8 : vector<16x64xf32>
    %10 = vector.shape_cast %9 : vector<16x64xf32> to vector<2x8x64xf32>
    %cst_8 = arith.constant 0.000000e+00 : f32
    %11 = vector.broadcast %cst_8 : f32 to vector<2x8x32xf32>
    %c0_9 = arith.constant 0 : index
    %c0_10 = arith.constant 0 : index
    %c0_11 = arith.constant 0 : index
    %12 = vector.load %arg2[%c0_9, %c0_10, %c0_11] : memref<2x8x32xf32, #tpu.memory_space<vmem>>, vector<2x8x32xf32>
    %13 = vector.shape_cast %12 : vector<2x8x32xf32> to vector<16x32xf32>
    %c0_12 = arith.constant 0 : index
    %c0_13 = arith.constant 0 : index
    %14 = vector.load %arg8[%c0_12, %c0_13] : memref<32x64xf32, #tpu.memory_space<vmem>>, vector<32x64xf32>
    %cst_14 = arith.constant dense<0.000000e+00> : vector<16x64xf32>
    %15 = tpu.matmul %13, %14, %cst_14 {dimension_numbers = #tpu.dot_dimension_numbers<[1], [0], [0], [1], [0, 0, 1, 1], [], []>} : vector<16x32xf32>, vector<32x64xf32>, vector<16x64xf32> -> vector<16x64xf32>
    %c0_15 = arith.constant 0 : index
    %c0_16 = arith.constant 0 : index
    %16 = vector.load %arg10[%c0_15, %c0_16] : memref<1x64xf32, #tpu.memory_space<vmem>>, vector<1x64xf32>
    %17 = vector.shape_cast %16 : vector<1x64xf32> to vector<64xf32>
    %18 = vector.shape_cast %17 : vector<64xf32> to vector<1x64xf32>
    %19 = vector.broadcast %18 : vector<1x64xf32> to vector<16x64xf32>
    %20 = arith.addf %15, %19 : vector<16x64xf32>
    %21 = vector.extract_strided_slice %20 {offsets = [0, 0], sizes = [16, 32], strides = [1, 1]} : vector<16x64xf32> to vector<16x32xf32>
    %22 = vector.shape_cast %21 : vector<16x32xf32> to vector<2x8x32xf32>
    %23 = vector.extract_strided_slice %20 {offsets = [0, 32], sizes = [16, 32], strides = [1, 1]} : vector<16x64xf32> to vector<16x32xf32>
    %24 = vector.shape_cast %23 : vector<16x32xf32> to vector<2x8x32xf32>
    %25 = vector.extract_strided_slice %10 {offsets = [0, 0, 0], sizes = [2, 8, 32], strides = [1, 1, 1]} : vector<2x8x64xf32> to vector<2x8x32xf32>
    "tpu.trace_start"() <{level = 10 : i32, message = "bqd,bkd->bqk"}> : () -> ()
    %cst_17 = arith.constant dense<0.000000e+00> : vector<2x8x8xf32>
    %26 = tpu.matmul %25, %22, %cst_17 {dimension_numbers = #tpu.dot_dimension_numbers<[2], [2], [1], [1], [0, 0, 0, 1, 1, 1], [0], [0]>} : vector<2x8x32xf32>, vector<2x8x32xf32>, vector<2x8x8xf32> -> vector<2x8x8xf32>
    "tpu.trace_stop"() : () -> ()
    %c0_18 = arith.constant 0 : index
    %c0_19 = arith.constant 0 : index
    %27 = vector.load %arg4[%c0_18, %c0_19] : memref<2x8xf32, #tpu.memory_space<vmem>>, vector<2x8xf32>
    %28 = vector.shape_cast %27 : vector<2x8xf32> to vector<2x1x8xf32>
    %cst_20 = arith.constant 0.000000e+00 : f32
    %29 = vector.broadcast %cst_20 : f32 to vector<2x1x8xf32>
    %30 = arith.cmpf ogt, %28, %29 : vector<2x1x8xf32>
    %cst_21 = arith.constant -1.000000e+09 : f32
    %31 = vector.shape_cast %30 : vector<2x1x8xi1> to vector<2x1x8xi1>
    %32 = vector.broadcast %31 : vector<2x1x8xi1> to vector<2x8x8xi1>
    %33 = vector.broadcast %cst_21 : f32 to vector<2x8x8xf32>
    %34 = arith.select %32, %26, %33 : vector<2x8x8xi1>, vector<2x8x8xf32>
    %cst_22 = arith.constant dense<0xFF800000> : vector<2x8xf32>
    %35 = vector.multi_reduction <maximumf>, %34, %cst_22 [2] : vector<2x8x8xf32> to vector<2x8xf32>
    %cst_23 = arith.constant 0xFF800000 : f32
    %36 = vector.broadcast %cst_23 : f32 to vector<2x8xf32>
    %37 = arith.maximumf %36, %35 : vector<2x8xf32>
    %38 = vector.shape_cast %37 : vector<2x8xf32> to vector<2x8x1xf32>
    %39 = vector.broadcast %38 : vector<2x8x1xf32> to vector<2x8x8xf32>
    %40 = arith.subf %34, %39 : vector<2x8x8xf32>
    %41 = math.exp %40 : vector<2x8x8xf32>
    %cst_24 = arith.constant dense<0.000000e+00> : vector<2x8xf32>
    %42 = vector.multi_reduction <add>, %41, %cst_24 [2] : vector<2x8x8xf32> to vector<2x8xf32>
    %43 = vector.shape_cast %42 : vector<2x8xf32> to vector<2x8x1xf32>
    %44 = vector.broadcast %43 : vector<2x8x1xf32> to vector<2x8x8xf32>
    %45 = arith.divf %41, %44 : vector<2x8x8xf32>
    "tpu.trace_start"() <{level = 10 : i32, message = "bqk,bkd->bqd"}> : () -> ()
    %cst_25 = arith.constant dense<0.000000e+00> : vector<2x8x32xf32>
    %46 = tpu.matmul %45, %24, %cst_25 {dimension_numbers = #tpu.dot_dimension_numbers<[2], [1], [1], [2], [0, 0, 0, 1, 1, 2], [0], [0]>} : vector<2x8x8xf32>, vector<2x8x32xf32>, vector<2x8x32xf32> -> vector<2x8x32xf32>
    "tpu.trace_stop"() : () -> ()
    %47 = arith.addf %11, %46 : vector<2x8x32xf32>
    %c0_26 = arith.constant 0 : index
    %c0_27 = arith.constant 0 : index
    %c0_28 = arith.constant 0 : index
    %48 = vector.load %arg3[%c0_26, %c0_27, %c0_28] : memref<2x16x32xf32, #tpu.memory_space<vmem>>, vector<2x16x32xf32>
    %49 = vector.shape_cast %48 : vector<2x16x32xf32> to vector<32x32xf32>
    %c0_29 = arith.constant 0 : index
    %c0_30 = arith.constant 0 : index
    %50 = vector.load %arg9[%c0_29, %c0_30] : memref<32x64xf32, #tpu.memory_space<vmem>>, vector<32x64xf32>
    %cst_31 = arith.constant dense<0.000000e+00> : vector<32x64xf32>
    %51 = tpu.matmul %49, %50, %cst_31 {dimension_numbers = #tpu.dot_dimension_numbers<[1], [0], [0], [1], [0, 0, 1, 1], [], []>} : vector<32x32xf32>, vector<32x64xf32>, vector<32x64xf32> -> vector<32x64xf32>
    %c0_32 = arith.constant 0 : index
    %c0_33 = arith.constant 0 : index
    %52 = vector.load %arg11[%c0_32, %c0_33] : memref<1x64xf32, #tpu.memory_space<vmem>>, vector<1x64xf32>
    %53 = vector.shape_cast %52 : vector<1x64xf32> to vector<64xf32>
    %54 = vector.shape_cast %53 : vector<64xf32> to vector<1x64xf32>
    %55 = vector.broadcast %54 : vector<1x64xf32> to vector<32x64xf32>
    %56 = arith.addf %51, %55 : vector<32x64xf32>
    %57 = vector.extract_strided_slice %56 {offsets = [0, 0], sizes = [32, 32], strides = [1, 1]} : vector<32x64xf32> to vector<32x32xf32>
    %58 = vector.shape_cast %57 : vector<32x32xf32> to vector<2x16x32xf32>
    %59 = vector.extract_strided_slice %56 {offsets = [0, 32], sizes = [32, 32], strides = [1, 1]} : vector<32x64xf32> to vector<32x32xf32>
    %60 = vector.shape_cast %59 : vector<32x32xf32> to vector<2x16x32xf32>
    %61 = vector.extract_strided_slice %10 {offsets = [0, 0, 32], sizes = [2, 8, 32], strides = [1, 1, 1]} : vector<2x8x64xf32> to vector<2x8x32xf32>
    "tpu.trace_start"() <{level = 10 : i32, message = "bqd,bkd->bqk"}> : () -> ()
    %cst_34 = arith.constant dense<0.000000e+00> : vector<2x8x16xf32>
    %62 = tpu.matmul %61, %58, %cst_34 {dimension_numbers = #tpu.dot_dimension_numbers<[2], [2], [1], [1], [0, 0, 0, 1, 1, 1], [0], [0]>} : vector<2x8x32xf32>, vector<2x16x32xf32>, vector<2x8x16xf32> -> vector<2x8x16xf32>
    "tpu.trace_stop"() : () -> ()
    %c0_35 = arith.constant 0 : index
    %c0_36 = arith.constant 0 : index
    %63 = vector.load %arg5[%c0_35, %c0_36] : memref<2x16xf32, #tpu.memory_space<vmem>>, vector<2x16xf32>
    %64 = vector.shape_cast %63 : vector<2x16xf32> to vector<2x1x16xf32>
    %cst_37 = arith.constant 0.000000e+00 : f32
    %65 = vector.broadcast %cst_37 : f32 to vector<2x1x16xf32>
    %66 = arith.cmpf ogt, %64, %65 : vector<2x1x16xf32>
    %cst_38 = arith.constant -1.000000e+09 : f32
    %67 = vector.shape_cast %66 : vector<2x1x16xi1> to vector<2x1x16xi1>
    %68 = vector.broadcast %67 : vector<2x1x16xi1> to vector<2x8x16xi1>
    %69 = vector.broadcast %cst_38 : f32 to vector<2x8x16xf32>
    %70 = arith.select %68, %62, %69 : vector<2x8x16xi1>, vector<2x8x16xf32>
    %cst_39 = arith.constant dense<0xFF800000> : vector<2x8xf32>
    %71 = vector.multi_reduction <maximumf>, %70, %cst_39 [2] : vector<2x8x16xf32> to vector<2x8xf32>
    %cst_40 = arith.constant 0xFF800000 : f32
    %72 = vector.broadcast %cst_40 : f32 to vector<2x8xf32>
    %73 = arith.maximumf %72, %71 : vector<2x8xf32>
    %74 = vector.shape_cast %73 : vector<2x8xf32> to vector<2x8x1xf32>
    %75 = vector.broadcast %74 : vector<2x8x1xf32> to vector<2x8x16xf32>
    %76 = arith.subf %70, %75 : vector<2x8x16xf32>
    %77 = math.exp %76 : vector<2x8x16xf32>
    %cst_41 = arith.constant dense<0.000000e+00> : vector<2x8xf32>
    %78 = vector.multi_reduction <add>, %77, %cst_41 [2] : vector<2x8x16xf32> to vector<2x8xf32>
    %79 = vector.shape_cast %78 : vector<2x8xf32> to vector<2x8x1xf32>
    %80 = vector.broadcast %79 : vector<2x8x1xf32> to vector<2x8x16xf32>
    %81 = arith.divf %77, %80 : vector<2x8x16xf32>
    "tpu.trace_start"() <{level = 10 : i32, message = "bqk,bkd->bqd"}> : () -> ()
    %cst_42 = arith.constant dense<0.000000e+00> : vector<2x8x32xf32>
    %82 = tpu.matmul %81, %60, %cst_42 {dimension_numbers = #tpu.dot_dimension_numbers<[2], [1], [1], [2], [0, 0, 0, 1, 1, 2], [0], [0]>} : vector<2x8x16xf32>, vector<2x16x32xf32>, vector<2x8x32xf32> -> vector<2x8x32xf32>
    "tpu.trace_stop"() : () -> ()
    %83 = arith.addf %47, %82 : vector<2x8x32xf32>
    %84 = vector.shape_cast %2 : vector<2x8xf32> to vector<2x8x1xf32>
    %85 = vector.broadcast %84 : vector<2x8x1xf32> to vector<2x8x32xf32>
    %86 = arith.mulf %83, %85 : vector<2x8x32xf32>
    %87 = arith.addf %0, %86 : vector<2x8x32xf32>
    %88 = vector.shape_cast %87 : vector<2x8x32xf32> to vector<16x32xf32>
    %cst_43 = arith.constant dense<0.000000e+00> : vector<16xf32>
    %89 = vector.multi_reduction <add>, %88, %cst_43 [1] : vector<16x32xf32> to vector<16xf32>
    %90 = vector.shape_cast %89 : vector<16xf32> to vector<16x1xf32>
    %cst_44 = arith.constant 3.200000e+01 : f32
    %91 = vector.broadcast %cst_44 : f32 to vector<16x1xf32>
    %92 = arith.divf %90, %91 : vector<16x1xf32>
    %93 = vector.broadcast %92 : vector<16x1xf32> to vector<16x32xf32>
    %94 = arith.subf %88, %93 : vector<16x32xf32>
    %95 = arith.mulf %94, %94 : vector<16x32xf32>
    %cst_45 = arith.constant dense<0.000000e+00> : vector<16xf32>
    %96 = vector.multi_reduction <add>, %95, %cst_45 [1] : vector<16x32xf32> to vector<16xf32>
    %97 = vector.shape_cast %96 : vector<16xf32> to vector<16x1xf32>
    %cst_46 = arith.constant 3.200000e+01 : f32
    %98 = vector.broadcast %cst_46 : f32 to vector<16x1xf32>
    %99 = arith.divf %97, %98 : vector<16x1xf32>
    %100 = vector.broadcast %92 : vector<16x1xf32> to vector<16x32xf32>
    %101 = arith.subf %88, %100 : vector<16x32xf32>
    %cst_47 = arith.constant 9.99999974E-6 : f32
    %102 = vector.broadcast %cst_47 : f32 to vector<16x1xf32>
    %103 = arith.addf %99, %102 : vector<16x1xf32>
    %104 = math.rsqrt %103 : vector<16x1xf32>
    %105 = vector.broadcast %104 : vector<16x1xf32> to vector<16x32xf32>
    %106 = arith.mulf %101, %105 : vector<16x32xf32>
    %c0_48 = arith.constant 0 : index
    %c0_49 = arith.constant 0 : index
    %107 = vector.load %arg12[%c0_48, %c0_49] : memref<1x32xf32, #tpu.memory_space<vmem>>, vector<1x32xf32>
    %108 = vector.shape_cast %107 : vector<1x32xf32> to vector<32xf32>
    %109 = vector.shape_cast %108 : vector<32xf32> to vector<1x32xf32>
    %110 = vector.broadcast %109 : vector<1x32xf32> to vector<16x32xf32>
    %111 = arith.mulf %106, %110 : vector<16x32xf32>
    %c0_50 = arith.constant 0 : index
    %c0_51 = arith.constant 0 : index
    %112 = vector.load %arg13[%c0_50, %c0_51] : memref<1x32xf32, #tpu.memory_space<vmem>>, vector<1x32xf32>
    %113 = vector.shape_cast %112 : vector<1x32xf32> to vector<32xf32>
    %114 = vector.shape_cast %113 : vector<32xf32> to vector<1x32xf32>
    %115 = vector.broadcast %114 : vector<1x32xf32> to vector<16x32xf32>
    %116 = arith.addf %111, %115 : vector<16x32xf32>
    %c0_52 = arith.constant 0 : index
    %c0_53 = arith.constant 0 : index
    %117 = vector.load %arg14[%c0_52, %c0_53] : memref<32x32xf32, #tpu.memory_space<vmem>>, vector<32x32xf32>
    %cst_54 = arith.constant dense<0.000000e+00> : vector<16x32xf32>
    %118 = tpu.matmul %116, %117, %cst_54 {dimension_numbers = #tpu.dot_dimension_numbers<[1], [0], [0], [1], [0, 0, 1, 1], [], []>} : vector<16x32xf32>, vector<32x32xf32>, vector<16x32xf32> -> vector<16x32xf32>
    %c0_55 = arith.constant 0 : index
    %c0_56 = arith.constant 0 : index
    %119 = vector.load %arg15[%c0_55, %c0_56] : memref<1x32xf32, #tpu.memory_space<vmem>>, vector<1x32xf32>
    %120 = vector.shape_cast %119 : vector<1x32xf32> to vector<32xf32>
    %121 = vector.shape_cast %120 : vector<32xf32> to vector<1x32xf32>
    %122 = vector.broadcast %121 : vector<1x32xf32> to vector<16x32xf32>
    %123 = arith.addf %118, %122 : vector<16x32xf32>
    %124 = math.tanh %123 : vector<16x32xf32>
    %c0_57 = arith.constant 0 : index
    %c0_58 = arith.constant 0 : index
    %125 = vector.load %arg16[%c0_57, %c0_58] : memref<32x16xf32, #tpu.memory_space<vmem>>, vector<32x16xf32>
    %cst_59 = arith.constant dense<0.000000e+00> : vector<16x16xf32>
    %126 = tpu.matmul %124, %125, %cst_59 {dimension_numbers = #tpu.dot_dimension_numbers<[1], [0], [0], [1], [0, 0, 1, 1], [], []>} : vector<16x32xf32>, vector<32x16xf32>, vector<16x16xf32> -> vector<16x16xf32>
    %c0_60 = arith.constant 0 : index
    %c0_61 = arith.constant 0 : index
    %127 = vector.load %arg17[%c0_60, %c0_61] : memref<1x16xf32, #tpu.memory_space<vmem>>, vector<1x16xf32>
    %128 = vector.shape_cast %127 : vector<1x16xf32> to vector<16xf32>
    %129 = vector.shape_cast %128 : vector<16xf32> to vector<1x16xf32>
    %130 = vector.broadcast %129 : vector<1x16xf32> to vector<16x16xf32>
    %131 = arith.addf %126, %130 : vector<16x16xf32>
    %132 = vector.shape_cast %131 : vector<16x16xf32> to vector<2x8x16xf32>
    %133 = tpu.concatenate %132, %34, %70 in 2 : vector<2x8x16xf32>, vector<2x8x8xf32>, vector<2x8x16xf32> -> vector<2x8x40xf32>
    %c0_62 = arith.constant 0 : index
    %c0_63 = arith.constant 0 : index
    %c0_64 = arith.constant 0 : index
    %134 = vector.load %arg18[%c0_62, %c0_63, %c0_64] : memref<2x8x40xf32, #tpu.memory_space<vmem>>, vector<2x8x40xf32>
    tpu.vector_store %arg18[%c0_62, %c0_63, %c0_64], %133 {strides = array<i32>} : memref<2x8x40xf32, #tpu.memory_space<vmem>>, vector<2x8x40xf32>,
    return
  }
}

</mosaic_0001>

<llo_original>
// kernel: tpu_custom_call.1
$region0: #{tpu_custom_call.1}
  #allocation0 [shape = 'u32[]', space=smem, size = 0x4, offset = 0x4, fixed_abs, tag = 'smem constant byte address 0x4 - core index']
  #allocation1 [shape = 'u32[144,128]{1,0:T(1,128)}', space=vmem, size = 0x12000, scoped, tag = 'internal scratch']
  %s0 = inlined_call_operand.hbm [shape: f32[2,8,32], index: 0, kind: input, shape index: {}]
  %s1 = inlined_call_operand.hbm [shape: f32[2,8], index: 1, kind: input, shape index: {}]
  %s2 = inlined_call_operand.hbm [shape: f32[2,8,32], index: 2, kind: input, shape index: {}]
  %s3 = inlined_call_operand.vmem [shape: f32[2,16,32], index: 3, kind: input, shape index: {}]
  %s4 = inlined_call_operand.hbm [shape: f32[2,8], index: 4, kind: input, shape index: {}]
  %s5 = inlined_call_operand.hbm [shape: f32[2,16], index: 5, kind: input, shape index: {}]
  %s6 = inlined_call_operand.vmem [shape: f32[32,64], index: 6, kind: input, shape index: {}]
  %s7 = inlined_call_operand.vmem [shape: f32[1,64], index: 7, kind: input, shape index: {}]
  %s8 = inlined_call_operand.hbm [shape: f32[32,64], index: 8, kind: input, shape index: {}]
  %s9 = inlined_call_operand.hbm [shape: f32[32,64], index: 9, kind: input, shape index: {}]
  %s10 = inlined_call_operand.hbm [shape: f32[1,64], index: 10, kind: input, shape index: {}]
  %s11 = inlined_call_operand.hbm [shape: f32[1,64], index: 11, kind: input, shape index: {}]
  %s12 = inlined_call_operand.hbm [shape: f32[1,32], index: 12, kind: input, shape index: {}]
  %s13 = inlined_call_operand.hbm [shape: f32[1,32], index: 13, kind: input, shape index: {}]
  %s14 = inlined_call_operand.vmem [shape: f32[32,32], index: 14, kind: input, shape index: {}]
  %s15 = inlined_call_operand.vmem [shape: f32[1,32], index: 15, kind: input, shape index: {}]
  %s16 = inlined_call_operand.vmem [shape: f32[32,16], index: 16, kind: input, shape index: {}]
  %s17 = inlined_call_operand.vmem [shape: f32[1,16], index: 17, kind: input, shape index: {}]
  %s18 = inlined_call_operand.hbm [shape: f32[2,8,40], index: 18, kind: output, shape index: {}]
  %s19 = sld [smem:[#allocation0]]
  $region126: #{tpu_custom_call.1} parent=0
    _
  %s21 = ssub.s32 1, %s19
  %s22 = scalar_select 0, %s21, %s19
  $region1: #{tpu_custom_call.1} parent=0
    #allocation2 [shape = 'u8[8192]{0}', space=vmem, size = 0x2000, scoped, tag = 'input window, operand 0, single buffered']
    #allocation3 [shape = 's32[1]{0}', space=sflag, size = 0x4, scoped, tag = 'scoped memory for tpu_custom_call.1']
    #allocation4 [shape = 's32[1]{0}', space=sflag, size = 0x4, scoped, tag = 'scoped memory for tpu_custom_call.1']
    #allocation5 [shape = 'u8[1024]{0}', space=vmem, size = 0x400, scoped, tag = 'input window, operand 1, single buffered']
    #allocation6 [shape = 's32[1]{0}', space=sflag, size = 0x4, scoped, tag = 'scoped memory for tpu_custom_call.1']
    #allocation7 [shape = 'u8[8192]{0}', space=vmem, size = 0x2000, scoped, tag = 'input window, operand 2, single buffered']
    #allocation8 [shape = 'u8[1024]{0}', space=vmem, size = 0x400, scoped, tag = 'input window, operand 4, single buffered']
    #allocation9 [shape = 's32[1]{0}', space=sflag, size = 0x4, scoped, tag = 'scoped memory for tpu_custom_call.1']
    #allocation10 [shape = 'u8[1024]{0}', space=vmem, size = 0x400, scoped, tag = 'input window, operand 5, single buffered']
    #allocation11 [shape = 'u8[16384]{0}', space=vmem, size = 0x4000, scoped, tag = 'input window, operand 8, single buffered']
    #allocation12 [shape = 's32[1]{0}', space=sflag, size = 0x4, scoped, tag = 'scoped memory for tpu_custom_call.1']
    #allocation13 [shape = 'u8[16384]{0}', space=vmem, size = 0x4000, scoped, tag = 'input window, operand 9, single buffered']
    #allocation14 [shape = 'u8[512]{0}', space=vmem, size = 0x400, scoped, tag = 'input window, operand 10, single buffered']
    #allocation15 [shape = 's32[1]{0}', space=sflag, size = 0x4, scoped, tag = 'scoped memory for tpu_custom_call.1']
    #allocation16 [shape = 'u8[512]{0}', space=vmem, size = 0x400, scoped, tag = 'input window, operand 11, single buffered']
    #allocation17 [shape = 'u8[512]{0}', space=vmem, size = 0x400, scoped, tag = 'input window, operand 12, single buffered']
    #allocation18 [shape = 's32[1]{0}', space=sflag, size = 0x4, scoped, tag = 'scoped memory for tpu_custom_call.1']
    #allocation19 [shape = 'u8[512]{0}', space=vmem, size = 0x400, scoped, tag = 'input window, operand 13, single buffered']
    #allocation20 [shape = 'u8[8192]{0}', space=vmem, size = 0x2000, scoped, tag = 'output window, operand 0, single buffered']
    %23 = vsyncpa [#allocation3], 0
    %24 = vsyncpa [#allocation6], 0
    %25 = vsyncpa [#allocation9], 0
    %26 = vsyncpa [#allocation12], 0
    %27 = vsyncpa [#allocation15], 0
    %28 = vsyncpa [#allocation18], 0
    %29 = vsyncpa [#allocation4], 0
    // Predicated region
    $region2: #{tpu_custom_call.1} parent=1 // pred_check
      _
    $region3: #{tpu_custom_call.1} parent=1 // pred_check_branch
      %31 = sbr.rel (0) target = $region5
    $region4: #{tpu_custom_call.1} parent=1 // pred_region
      %s33 = ssub.s32 256, 256
      %34 = vsyncadd [#allocation3], %s33
      %s35 = sshll.u32 [#allocation2], 4
      %s36 = int_to_ptr.vmem [resolvable:$true] %s35
      %41 = dma.hbm_to_vmem [thread:$0]  %s0, 256, %s36, [#allocation3], 128, 128, 8
    $region5: #{tpu_custom_call.1} parent=1 // pred_fallthru
      _
    // Predicated region
    $region6: #{tpu_custom_call.1} parent=1 // pred_check
      _
    $region7: #{tpu_custom_call.1} parent=1 // pred_check_branch
      %43 = sbr.rel (0) target = $region9
    $region8: #{tpu_custom_call.1} parent=1 // pred_region
      %s45 = ssub.s32 32, 32
      %46 = vsyncadd [#allocation6], %s45
      %s48 = sshll.u32 [#allocation5], 4
      %s49 = int_to_ptr.vmem [resolvable:$true] %s48
      %51 = dma.hbm_to_vmem [thread:$0]  %s1, 32, %s49, [#allocation6]
    $region9: #{tpu_custom_call.1} parent=1 // pred_fallthru
      _
    // Predicated region
    $region10: #{tpu_custom_call.1} parent=1 // pred_check
      _
    $region11: #{tpu_custom_call.1} parent=1 // pred_check_branch
      %53 = sbr.rel (0) target = $region13
    $region12: #{tpu_custom_call.1} parent=1 // pred_region
      %s55 = ssub.s32 256, 256
      %56 = vsyncadd [#allocation6], %s55
      %s57 = sshll.u32 [#allocation7], 4
      %s58 = int_to_ptr.vmem [resolvable:$true] %s57
      %63 = dma.hbm_to_vmem [thread:$0]  %s2, 256, %s58, [#allocation6], 128, 128, 8
    $region13: #{tpu_custom_call.1} parent=1 // pred_fallthru
      _
    // Predicated region
    $region14: #{tpu_custom_call.1} parent=1 // pred_check
      _
    $region15: #{tpu_custom_call.1} parent=1 // pred_check_branch
      %65 = sbr.rel (0) target = $region17
    $region16: #{tpu_custom_call.1} parent=1 // pred_region
      _
    $region17: #{tpu_custom_call.1} parent=1 // pred_fallthru
      _
    // Predicated region
    $region18: #{tpu_custom_call.1} parent=1 // pred_check
      _
    $region19: #{tpu_custom_call.1} parent=1 // pred_check_branch
      %67 = sbr.rel (0) target = $region21
    $region20: #{tpu_custom_call.1} parent=1 // pred_region
      %s69 = ssub.s32 32, 32
      %70 = vsyncadd [#allocation9], %s69
      %s72 = sshll.u32 [#allocation8], 4
      %s73 = int_to_ptr.vmem [resolvable:$true] %s72
      %75 = dma.hbm_to_vmem [thread:$0]  %s4, 32, %s73, [#allocation9]
    $region21: #{tpu_custom_call.1} parent=1 // pred_fallthru
      _
    // Predicated region
    $region22: #{tpu_custom_call.1} parent=1 // pred_check
      _
    $region23: #{tpu_custom_call.1} parent=1 // pred_check_branch
      %77 = sbr.rel (0) target = $region25
    $region24: #{tpu_custom_call.1} parent=1 // pred_region
      %s79 = ssub.s32 32, 32
      %80 = vsyncadd [#allocation9], %s79
      %s82 = sshll.u32 [#allocation10], 4
      %s83 = int_to_ptr.vmem [resolvable:$true] %s82
      %85 = dma.hbm_to_vmem [thread:$0]  %s5, 32, %s83, [#allocation9]
    $region25: #{tpu_custom_call.1} parent=1 // pred_fallthru
      _
    // Predicated region
    $region26: #{tpu_custom_call.1} parent=1 // pred_check
      _
    $region27: #{tpu_custom_call.1} parent=1 // pred_check_branch
      %87 = sbr.rel (0) target = $region29
    $region28: #{tpu_custom_call.1} parent=1 // pred_region
      _
    $region29: #{tpu_custom_call.1} parent=1 // pred_fallthru
      _
    // Predicated region
    $region30: #{tpu_custom_call.1} parent=1 // pred_check
      _
    $region31: #{tpu_custom_call.1} parent=1 // pred_check_branch
      %89 = sbr.rel (0) target = $region33
    $region32: #{tpu_custom_call.1} parent=1 // pred_region
      _
    $region33: #{tpu_custom_call.1} parent=1 // pred_fallthru
      _
    // Predicated region
    $region34: #{tpu_custom_call.1} parent=1 // pred_check
      _
    $region35: #{tpu_custom_call.1} parent=1 // pred_check_branch
      %91 = sbr.rel (0) target = $region37
    $region36: #{tpu_custom_call.1} parent=1 // pred_region
      %s93 = ssub.s32 512, 512
      %94 = vsyncadd [#allocation12], %s93
      %s95 = sshll.u32 [#allocation11], 4
      %s96 = int_to_ptr.vmem [resolvable:$true] %s95
      %101 = dma.hbm_to_vmem [thread:$0]  %s8, 512, %s96, [#allocation12], 128, 128, 8
    $region37: #{tpu_custom_call.1} parent=1 // pred_fallthru
      _
    // Predicated region
    $region38: #{tpu_custom_call.1} parent=1 // pred_check
      _
    $region39: #{tpu_custom_call.1} parent=1 // pred_check_branch
      %103 = sbr.rel (0) target = $region41
    $region40: #{tpu_custom_call.1} parent=1 // pred_region
      %s105 = ssub.s32 512, 512
      %106 = vsyncadd [#allocation12], %s105
      %s107 = sshll.u32 [#allocation13], 4
      %s108 = int_to_ptr.vmem [resolvable:$true] %s107
      %113 = dma.hbm_to_vmem [thread:$0]  %s9, 512, %s108, [#allocation12], 128, 128, 8
    $region41: #{tpu_custom_call.1} parent=1 // pred_fallthru
      _
    // Predicated region
    $region42: #{tpu_custom_call.1} parent=1 // pred_check
      _
    $region43: #{tpu_custom_call.1} parent=1 // pred_check_branch
      %115 = sbr.rel (0) target = $region45
    $region44: #{tpu_custom_call.1} parent=1 // pred_region
      %s117 = ssub.s32 16, 16
      %118 = vsyncadd [#allocation15], %s117
      %s120 = sshll.u32 [#allocation14], 4
      %s121 = int_to_ptr.vmem [resolvable:$true] %s120
      %123 = dma.hbm_to_vmem [thread:$0]  %s10, 16, %s121, [#allocation15]
    $region45: #{tpu_custom_call.1} parent=1 // pred_fallthru
      _
    // Predicated region
    $region46: #{tpu_custom_call.1} parent=1 // pred_check
      _
    $region47: #{tpu_custom_call.1} parent=1 // pred_check_branch
      %125 = sbr.rel (0) target = $region49
    $region48: #{tpu_custom_call.1} parent=1 // pred_region
      %s127 = ssub.s32 16, 16
      %128 = vsyncadd [#allocation15], %s127
      %s130 = sshll.u32 [#allocation16], 4
      %s131 = int_to_ptr.vmem [resolvable:$true] %s130
      %133 = dma.hbm_to_vmem [thread:$0]  %s11, 16, %s131, [#allocation15]
    $region49: #{tpu_custom_call.1} parent=1 // pred_fallthru
      _
    // Predicated region
    $region50: #{tpu_custom_call.1} parent=1 // pred_check
      _
    $region51: #{tpu_custom_call.1} parent=1 // pred_check_branch
      %135 = sbr.rel (0) target = $region53
    $region52: #{tpu_custom_call.1} parent=1 // pred_region
      %s137 = ssub.s32 16, 16
      %138 = vsyncadd [#allocation18], %s137
      %s140 = sshll.u32 [#allocation17], 4
      %s141 = int_to_ptr.vmem [resolvable:$true] %s140
      %143 = dma.hbm_to_vmem [thread:$0]  %s12, 16, %s141, [#allocation18]
    $region53: #{tpu_custom_call.1} parent=1 // pred_fallthru
      _
    // Predicated region
    $region54: #{tpu_custom_call.1} parent=1 // pred_check
      _
    $region55: #{tpu_custom_call.1} parent=1 // pred_check_branch
      %145 = sbr.rel (0) target = $region57
    $region56: #{tpu_custom_call.1} parent=1 // pred_region
      %s147 = ssub.s32 16, 16
      %148 = vsyncadd [#allocation18], %s147
      %s150 = sshll.u32 [#allocation19], 4
      %s151 = int_to_ptr.vmem [resolvable:$true] %s150
      %153 = dma.hbm_to_vmem [thread:$0]  %s13, 16, %s151, [#allocation18]
    $region57: #{tpu_custom_call.1} parent=1 // pred_fallthru
      _
    // Predicated region
    $region58: #{tpu_custom_call.1} parent=1 // pred_check
      _
    $region59: #{tpu_custom_call.1} parent=1 // pred_check_branch
      %155 = sbr.rel (0) target = $region61
    $region60: #{tpu_custom_call.1} parent=1 // pred_region
      _
    $region61: #{tpu_custom_call.1} parent=1 // pred_fallthru
      _
    // Predicated region
    $region62: #{tpu_custom_call.1} parent=1 // pred_check
      _
    $region63: #{tpu_custom_call.1} parent=1 // pred_check_branch
      %157 = sbr.rel (0) target = $region65
    $region64: #{tpu_custom_call.1} parent=1 // pred_region
      _
    $region65: #{tpu_custom_call.1} parent=1 // pred_fallthru
      _
    // Predicated region
    $region66: #{tpu_custom_call.1} parent=1 // pred_check
      _
    $region67: #{tpu_custom_call.1} parent=1 // pred_check_branch
      %159 = sbr.rel (0) target = $region69
    $region68: #{tpu_custom_call.1} parent=1 // pred_region
      _
    $region69: #{tpu_custom_call.1} parent=1 // pred_fallthru
      _
    // Predicated region
    $region70: #{tpu_custom_call.1} parent=1 // pred_check
      _
    $region71: #{tpu_custom_call.1} parent=1 // pred_check_branch
      %161 = sbr.rel (0) target = $region73
    $region72: #{tpu_custom_call.1} parent=1 // pred_region
      _
    $region73: #{tpu_custom_call.1} parent=1 // pred_fallthru
      _
    // Predicated region
    $region74: #{tpu_custom_call.1} parent=1 // pred_check
      _
    $region75: #{tpu_custom_call.1} parent=1 // pred_check_branch
      %163 = sbr.rel (0) target = $region77
    $region76: #{tpu_custom_call.1} parent=1 // pred_region
      %164 = dma.done [#allocation3], 256
    $region77: #{tpu_custom_call.1} parent=1 // pred_fallthru
      _
    // Predicated region
    $region78: #{tpu_custom_call.1} parent=1 // pred_check
      _
    $region79: #{tpu_custom_call.1} parent=1 // pred_check_branch
      %166 = sbr.rel (0) target = $region81
    $region80: #{tpu_custom_call.1} parent=1 // pred_region
      %167 = dma.done [#allocation6], 32
    $region81: #{tpu_custom_call.1} parent=1 // pred_fallthru
      _
    // Predicated region
    $region82: #{tpu_custom_call.1} parent=1 // pred_check
      _
    $region83: #{tpu_custom_call.1} parent=1 // pred_check_branch
      %169 = sbr.rel (0) target = $region85
    $region84: #{tpu_custom_call.1} parent=1 // pred_region
      %170 = dma.done [#allocation6], 256
    $region85: #{tpu_custom_call.1} parent=1 // pred_fallthru
      _
    // Predicated region
    $region86: #{tpu_custom_call.1} parent=1 // pred_check
      _
    $region87: #{tpu_custom_call.1} parent=1 // pred_check_branch
      %172 = sbr.rel (0) target = $region89
    $region88: #{tpu_custom_call.1} parent=1 // pred_region
      %173 = dma.done [#allocation9], 32
    $region89: #{tpu_custom_call.1} parent=1 // pred_fallthru
      _
    // Predicated region
    $region90: #{tpu_custom_call.1} parent=1 // pred_check
      _
    $region91: #{tpu_custom_call.1} parent=1 // pred_check_branch
      %175 = sbr.rel (0) target = $region93
    $region92: #{tpu_custom_call.1} parent=1 // pred_region
      %176 = dma.done [#allocation9], 32
    $region93: #{tpu_custom_call.1} parent=1 // pred_fallthru
      _
    // Predicated region
    $region94: #{tpu_custom_call.1} parent=1 // pred_check
      _
    $region95: #{tpu_custom_call.1} parent=1 // pred_check_branch
      %178 = sbr.rel (0) target = $region97
    $region96: #{tpu_custom_call.1} parent=1 // pred_region
      %179 = dma.done [#allocation12], 512
    $region97: #{tpu_custom_call.1} parent=1 // pred_fallthru
      _
    // Predicated region
    $region98: #{tpu_custom_call.1} parent=1 // pred_check
      _
    $region99: #{tpu_custom_call.1} parent=1 // pred_check_branch
      %181 = sbr.rel (0) target = $region101
    $region100: #{tpu_custom_call.1} parent=1 // pred_region
      %182 = dma.done [#allocation12], 512
    $region101: #{tpu_custom_call.1} parent=1 // pred_fallthru
      _
    // Predicated region
    $region102: #{tpu_custom_call.1} parent=1 // pred_check
      _
    $region103: #{tpu_custom_call.1} parent=1 // pred_check_branch
      %184 = sbr.rel (0) target = $region105
    $region104: #{tpu_custom_call.1} parent=1 // pred_region
      %185 = dma.done [#allocation15], 16
    $region105: #{tpu_custom_call.1} parent=1 // pred_fallthru
      _
    // Predicated region
    $region106: #{tpu_custom_call.1} parent=1 // pred_check
      _
    $region107: #{tpu_custom_call.1} parent=1 // pred_check_branch
      %187 = sbr.rel (0) target = $region109
    $region108: #{tpu_custom_call.1} parent=1 // pred_region
      %188 = dma.done [#allocation15], 16
    $region109: #{tpu_custom_call.1} parent=1 // pred_fallthru
      _
    // Predicated region
    $region110: #{tpu_custom_call.1} parent=1 // pred_check
      _
    $region111: #{tpu_custom_call.1} parent=1 // pred_check_branch
      %190 = sbr.rel (0) target = $region113
    $region112: #{tpu_custom_call.1} parent=1 // pred_region
      %191 = dma.done [#allocation18], 16
    $region113: #{tpu_custom_call.1} parent=1 // pred_fallthru
      _
    // Predicated region
    $region114: #{tpu_custom_call.1} parent=1 // pred_check
      _
    $region115: #{tpu_custom_call.1} parent=1 // pred_check_branch
      %193 = sbr.rel (0) target = $region117
    $region116: #{tpu_custom_call.1} parent=1 // pred_region
      %194 = dma.done [#allocation18], 16
    $region117: #{tpu_custom_call.1} parent=1 // pred_fallthru
      _
    %v195 = vld [vmem:[#allocation2] sm:$0xff]
    %v196 = vld [vmem:[#allocation2 + $0x8] sm:$0xff]
    %v197 = vld [vmem:[#allocation5] sm:$0x3]
    %v198 = vld [vmem:[%s6] sm:$0xff]
    %v199 = vld [vmem:[%s6 + $0x8] sm:$0xff]
    %v200 = vld [vmem:[%s6 + $0x10] sm:$0xff]
    %v201 = vld [vmem:[%s6 + $0x18] sm:$0xff]
    %v202 = vld [vmem:[%s7] sm:$0x1]
    %v204 = vlaneseq
    %v205 = vshrl.u32 %v204, 7
    %v206 = vsub.s32 0, %v205
    %v207 = vrot.slane %v202, %v206
    %vm209 = vcmask 261120
    %v211 = vsel %vm209, %v195, 0
    %v214 = vsel %vm209, %v196, 0
    %216 = vmatprep.subr.mxu0 0.0
    %217 = vmatpush1.msra.mxu0 %v198
    %218 = vmatprep.subr.mxu0 0.0
    %219 = vmatpush1.msra.mxu0 %v199
    %220 = vmatprep.subr.mxu0 0.0
    %221 = vmatpush1.msra.mxu0 %v200
    %222 = vmatprep.subr.mxu0 0.0
    %223 = vmatpush1.msra.mxu0 %v201
    %224 = vmatprep.subr.mxu0 0.0
    %225 = vmatpush1.msra.mxu0 0.0
    %226 = vmatprep.subr.mxu0 0.0
    %227 = vmatpush1.msra.mxu0 0.0
    %228 = vmatprep.subr.mxu0 0.0
    %229 = vmatpush1.msra.mxu0 0.0
    %230 = vmatprep.subr.mxu0 0.0
    %231 = vmatpush1.msra.mxu0 0.0
    %232 = vmatprep.subr.mxu0 0.0
    %233 = vmatpush1.msra.mxu0 0.0
    %234 = vmatprep.subr.mxu0 0.0
    %235 = vmatpush1.msra.mxu0 0.0
    %236 = vmatprep.subr.mxu0 0.0
    %237 = vmatpush1.msra.mxu0 0.0
    %238 = vmatprep.subr.mxu0 0.0
    %239 = vmatpush1.msra.mxu0 0.0
    %240 = vmatprep.subr.mxu0 0.0
    %241 = vmatpush1.msra.mxu0 0.0
    %242 = vmatprep.subr.mxu0 0.0
    %243 = vmatpush1.msra.mxu0 0.0
    %244 = vmatprep.subr.mxu0 0.0
    %245 = vmatpush1.msra.mxu0 0.0
    %246 = vmatprep.subr.mxu0 0.0
    %247 = vmatpush1.msra.mxu0 0.0
    %248 = vmatprep.subr.mxu0 0.0
    %249 = vmatpush1.msra.mxu0 0.0
    %250 = vmatprep.subr.mxu0 0.0
    %251 = vmatpush1.msra.mxu0 0.0
    %252 = vmatprep.subr.mxu0 0.0
    %253 = vmatpush1.msra.mxu0 0.0
    %254 = vmatprep.subr.mxu0 0.0
    %255 = vmatpush1.msra.mxu0 0.0
    %256 = vmatprep.subr.mxu0 0.0
    %257 = vmatpush1.msra.mxu0 0.0
    %258 = vmatprep.subr.mxu0 0.0
    %259 = vmatpush1.msra.mxu0 0.0
    %260 = vmatprep.subr.mxu0 0.0
    %261 = vmatpush1.msra.mxu0 0.0
    %262 = vmatprep.subr.mxu0 0.0
    %263 = vmatpush1.msra.mxu0 0.0
    %264 = vmatprep.subr.mxu0 0.0
    %265 = vmatpush1.msra.mxu0 0.0
    %266 = vmatprep.subr.mxu0 0.0
    %267 = vmatpush1.msra.mxu0 0.0
    %268 = vmatprep.subr.mxu0 0.0
    %269 = vmatpush1.msra.mxu0 0.0
    %270 = vmatprep.subr.mxu0 0.0
    %271 = vmatpush1.msra.mxu0 0.0
    %272 = vmatprep.subr.mxu0 0.0
    %273 = vmatpush1.msra.mxu0 0.0
    %274 = vmatprep.subr.mxu0 0.0
    %275 = vmatpush1.msra.mxu0 0.0
    %276 = vmatprep.subr.mxu0 0.0
    %277 = vmatpush1.msra.mxu0 0.0
    %278 = vmatprep.subr.mxu0 0.0
    %279 = vmatpush1.msra.mxu0 0.0
    %280 = vmatprep.mubr.f32.mxu0 0.0
    %281 = vmatmul.mubr.f32.gmra.mrb[0].mxu0 %v211
    %v282 = vpop.f32.mrb[0].mxu0
    %v283 = vadd.f32 %v207, %v282
    %v284 = vpop.f32.mrb[0].mxu0
    %285 = vmatprep.mubr.f32.mxu0 0.0
    %286 = vmatmul.mubr.f32.gmra.mrb[0].mxu0 %v214
    %v287 = vpop.f32.mrb[0].mxu0
    %v288 = vadd.f32 %v207, %v287
    %v289 = vpop.f32.mrb[0].mxu0
    %290 = vdwg.mxu0
    %v291 = vld [vmem:[#allocation7] sm:$0xff]
    %v292 = vld [vmem:[#allocation7 + $0x8] sm:$0xff]
    %v293 = vld [vmem:[#allocation11] sm:$0xff]
    %v294 = vld [vmem:[#allocation11 + $0x8] sm:$0xff]
    %v295 = vld [vmem:[#allocation11 + $0x10] sm:$0xff]
    %v296 = vld [vmem:[#allocation11 + $0x18] sm:$0xff]
    %v297 = vld [vmem:[#allocation14] sm:$0x1]
    %v299 = vlaneseq
    %v300 = vshrl.u32 %v299, 7
    %v301 = vsub.s32 0, %v300
    %v302 = vrot.slane %v297, %v301
    %v305 = vsel %vm209, %v291, 0
    %v308 = vsel %vm209, %v292, 0
    %310 = vmatprep.subr.mxu0 0.0
    %311 = vmatpush1.msra.mxu0 %v293
    %312 = vmatprep.subr.mxu0 0.0
    %313 = vmatpush1.msra.mxu0 %v294
    %314 = vmatprep.subr.mxu0 0.0
    %315 = vmatpush1.msra.mxu0 %v295
    %316 = vmatprep.subr.mxu0 0.0
    %317 = vmatpush1.msra.mxu0 %v296
    %318 = vmatprep.subr.mxu0 0.0
    %319 = vmatpush1.msra.mxu0 0.0
    %320 = vmatprep.subr.mxu0 0.0
    %321 = vmatpush1.msra.mxu0 0.0
    %322 = vmatprep.subr.mxu0 0.0
    %323 = vmatpush1.msra.mxu0 0.0
    %324 = vmatprep.subr.mxu0 0.0
    %325 = vmatpush1.msra.mxu0 0.0
    %326 = vmatprep.subr.mxu0 0.0
    %327 = vmatpush1.msra.mxu0 0.0
    %328 = vmatprep.subr.mxu0 0.0
    %329 = vmatpush1.msra.mxu0 0.0
    %330 = vmatprep.subr.mxu0 0.0
    %331 = vmatpush1.msra.mxu0 0.0
    %332 = vmatprep.subr.mxu0 0.0
    %333 = vmatpush1.msra.mxu0 0.0
    %334 = vmatprep.subr.mxu0 0.0
    %335 = vmatpush1.msra.mxu0 0.0
    %336 = vmatprep.subr.mxu0 0.0
    %337 = vmatpush1.msra.mxu0 0.0
    %338 = vmatprep.subr.mxu0 0.0
    %339 = vmatpush1.msra.mxu0 0.0
    %340 = vmatprep.subr.mxu0 0.0
    %341 = vmatpush1.msra.mxu0 0.0
    %342 = vmatprep.subr.mxu0 0.0
    %343 = vmatpush1.msra.mxu0 0.0
    %344 = vmatprep.subr.mxu0 0.0
    %345 = vmatpush1.msra.mxu0 0.0
    %346 = vmatprep.subr.mxu0 0.0
    %347 = vmatpush1.msra.mxu0 0.0
    %348 = vmatprep.subr.mxu0 0.0
    %349 = vmatpush1.msra.mxu0 0.0
    %350 = vmatprep.subr.mxu0 0.0
    %351 = vmatpush1.msra.mxu0 0.0
    %352 = vmatprep.subr.mxu0 0.0
    %353 = vmatpush1.msra.mxu0 0.0
    %354 = vmatprep.subr.mxu0 0.0
    %355 = vmatpush1.msra.mxu0 0.0
    %356 = vmatprep.subr.mxu0 0.0
    %357 = vmatpush1.msra.mxu0 0.0
    %358 = vmatprep.subr.mxu0 0.0
    %359 = vmatpush1.msra.mxu0 0.0
    %360 = vmatprep.subr.mxu0 0.0
    %361 = vmatpush1.msra.mxu0 0.0
    %362 = vmatprep.subr.mxu0 0.0
    %363 = vmatpush1.msra.mxu0 0.0
    %364 = vmatprep.subr.mxu0 0.0
    %365 = vmatpush1.msra.mxu0 0.0
    %366 = vmatprep.subr.mxu0 0.0
    %367 = vmatpush1.msra.mxu0 0.0
    %368 = vmatprep.subr.mxu0 0.0
    %369 = vmatpush1.msra.mxu0 0.0
    %370 = vmatprep.subr.mxu0 0.0
    %371 = vmatpush1.msra.mxu0 0.0
    %372 = vmatprep.subr.mxu0 0.0
    %373 = vmatpush1.msra.mxu0 0.0
    %374 = vmatprep.mubr.f32.mxu0 0.0
    %375 = vmatmul.mubr.f32.gmra.mrb[0].mxu0 %v305
    %v376 = vpop.f32.mrb[0].mxu0
    %v377 = vadd.f32 %v302, %v376
    %v378 = vpop.f32.mrb[0].mxu0
    %379 = vmatprep.mubr.f32.mxu0 0.0
    %380 = vmatmul.mubr.f32.gmra.mrb[0].mxu0 %v308
    %v381 = vpop.f32.mrb[0].mxu0
    %v382 = vadd.f32 %v302, %v381
    %v383 = vpop.f32.mrb[0].mxu0
    %384 = vdwg.mxu0
    %v386 = vsel %vm209, %v283, 0
    %v389 = vsel %vm209, %v377, 0
    %391 = vmatprep.subr.mxu0 0.0
    %392 = vmatpush1.xpose.msra.mxu0 %v389
    %393 = vmatprep.subr.mxu0 0.0
    %394 = vmatpush1.xpose.msra.mxu0 0.0
    %395 = vmatprep.subr.mxu0 0.0
    %396 = vmatpush1.xpose.msra.mxu0 0.0
    %397 = vmatprep.subr.mxu0 0.0
    %398 = vmatpush1.xpose.msra.mxu0 0.0
    %399 = vmatprep.subr.mxu0 0.0
    %400 = vmatpush1.xpose.msra.mxu0 0.0
    %401 = vmatprep.subr.mxu0 0.0
    %402 = vmatpush1.xpose.msra.mxu0 0.0
    %403 = vmatprep.subr.mxu0 0.0
    %404 = vmatpush1.xpose.msra.mxu0 0.0
    %405 = vmatprep.subr.mxu0 0.0
    %406 = vmatpush1.xpose.msra.mxu0 0.0
    %407 = vmatprep.subr.mxu0 0.0
    %408 = vmatpush1.xpose.msra.mxu0 0.0
    %409 = vmatprep.subr.mxu0 0.0
    %410 = vmatpush1.xpose.msra.mxu0 0.0
    %411 = vmatprep.subr.mxu0 0.0
    %412 = vmatpush1.xpose.msra.mxu0 0.0
    %413 = vmatprep.subr.mxu0 0.0
    %414 = vmatpush1.xpose.msra.mxu0 0.0
    %415 = vmatprep.subr.mxu0 0.0
    %416 = vmatpush1.xpose.msra.mxu0 0.0
    %417 = vmatprep.subr.mxu0 0.0
    %418 = vmatpush1.xpose.msra.mxu0 0.0
    %419 = vmatprep.subr.mxu0 0.0
    %420 = vmatpush1.xpose.msra.mxu0 0.0
    %421 = vmatprep.subr.mxu0 0.0
    %422 = vmatpush1.xpose.msra.mxu0 0.0
    %423 = vmatprep.subr.mxu0 0.0
    %424 = vmatpush1.xpose.msra.mxu0 0.0
    %425 = vmatprep.subr.mxu0 0.0
    %426 = vmatpush1.xpose.msra.mxu0 0.0
    %427 = vmatprep.subr.mxu0 0.0
    %428 = vmatpush1.xpose.msra.mxu0 0.0
    %429 = vmatprep.subr.mxu0 0.0
    %430 = vmatpush1.xpose.msra.mxu0 0.0
    %431 = vmatprep.subr.mxu0 0.0
    %432 = vmatpush1.xpose.msra.mxu0 0.0
    %433 = vmatprep.subr.mxu0 0.0
    %434 = vmatpush1.xpose.msra.mxu0 0.0
    %435 = vmatprep.subr.mxu0 0.0
    %436 = vmatpush1.xpose.msra.mxu0 0.0
    %437 = vmatprep.subr.mxu0 0.0
    %438 = vmatpush1.xpose.msra.mxu0 0.0
    %439 = vmatprep.subr.mxu0 0.0
    %440 = vmatpush1.xpose.msra.mxu0 0.0
    %441 = vmatprep.subr.mxu0 0.0
    %442 = vmatpush1.xpose.msra.mxu0 0.0
    %443 = vmatprep.subr.mxu0 0.0
    %444 = vmatpush1.xpose.msra.mxu0 0.0
    %445 = vmatprep.subr.mxu0 0.0
    %446 = vmatpush1.xpose.msra.mxu0 0.0
    %447 = vmatprep.subr.mxu0 0.0
    %448 = vmatpush1.xpose.msra.mxu0 0.0
    %449 = vmatprep.subr.mxu0 0.0
    %450 = vmatpush1.xpose.msra.mxu0 0.0
    %451 = vmatprep.subr.mxu0 0.0
    %452 = vmatpush1.xpose.msra.mxu0 0.0
    %453 = vmatprep.subr.mxu0 0.0
    %454 = vmatpush1.xpose.msra.mxu0 0.0
    %455 = vmatprep.mubr.f32.mxu0 0.0
    %456 = vmatmul.mubr.f32.gmra.mrb[0].mxu0 %v386
    %v457 = vpop.f32.mrb[0].mxu0
    %v458 = vadd.f32 0.0, %v457
    %v459 = vpop.f32.mrb[0].mxu0
    %460 = vdwg.mxu0
    %v462 = vsel %vm209, %v288, 0
    %v465 = vsel %vm209, %v382, 0
    %467 = vmatprep.subr.mxu0 0.0
    %468 = vmatpush1.xpose.msra.mxu0 %v465
    %469 = vmatprep.subr.mxu0 0.0
    %470 = vmatpush1.xpose.msra.mxu0 0.0
    %471 = vmatprep.subr.mxu0 0.0
    %472 = vmatpush1.xpose.msra.mxu0 0.0
    %473 = vmatprep.subr.mxu0 0.0
    %474 = vmatpush1.xpose.msra.mxu0 0.0
    %475 = vmatprep.subr.mxu0 0.0
    %476 = vmatpush1.xpose.msra.mxu0 0.0
    %477 = vmatprep.subr.mxu0 0.0
    %478 = vmatpush1.xpose.msra.mxu0 0.0
    %479 = vmatprep.subr.mxu0 0.0
    %480 = vmatpush1.xpose.msra.mxu0 0.0
    %481 = vmatprep.subr.mxu0 0.0
    %482 = vmatpush1.xpose.msra.mxu0 0.0
    %483 = vmatprep.subr.mxu0 0.0
    %484 = vmatpush1.xpose.msra.mxu0 0.0
    %485 = vmatprep.subr.mxu0 0.0
    %486 = vmatpush1.xpose.msra.mxu0 0.0
    %487 = vmatprep.subr.mxu0 0.0
    %488 = vmatpush1.xpose.msra.mxu0 0.0
    %489 = vmatprep.subr.mxu0 0.0
    %490 = vmatpush1.xpose.msra.mxu0 0.0
    %491 = vmatprep.subr.mxu0 0.0
    %492 = vmatpush1.xpose.msra.mxu0 0.0
    %493 = vmatprep.subr.mxu0 0.0
    %494 = vmatpush1.xpose.msra.mxu0 0.0
    %495 = vmatprep.subr.mxu0 0.0
    %496 = vmatpush1.xpose.msra.mxu0 0.0
    %497 = vmatprep.subr.mxu0 0.0
    %498 = vmatpush1.xpose.msra.mxu0 0.0
    %499 = vmatprep.subr.mxu0 0.0
    %500 = vmatpush1.xpose.msra.mxu0 0.0
    %501 = vmatprep.subr.mxu0 0.0
    %502 = vmatpush1.xpose.msra.mxu0 0.0
    %503 = vmatprep.subr.mxu0 0.0
    %504 = vmatpush1.xpose.msra.mxu0 0.0
    %505 = vmatprep.subr.mxu0 0.0
    %506 = vmatpush1.xpose.msra.mxu0 0.0
    %507 = vmatprep.subr.mxu0 0.0
    %508 = vmatpush1.xpose.msra.mxu0 0.0
    %509 = vmatprep.subr.mxu0 0.0
    %510 = vmatpush1.xpose.msra.mxu0 0.0
    %511 = vmatprep.subr.mxu0 0.0
    %512 = vmatpush1.xpose.msra.mxu0 0.0
    %513 = vmatprep.subr.mxu0 0.0
    %514 = vmatpush1.xpose.msra.mxu0 0.0
    %515 = vmatprep.subr.mxu0 0.0
    %516 = vmatpush1.xpose.msra.mxu0 0.0
    %517 = vmatprep.subr.mxu0 0.0
    %518 = vmatpush1.xpose.msra.mxu0 0.0
    %519 = vmatprep.subr.mxu0 0.0
    %520 = vmatpush1.xpose.msra.mxu0 0.0
    %521 = vmatprep.subr.mxu0 0.0
    %522 = vmatpush1.xpose.msra.mxu0 0.0
    %523 = vmatprep.subr.mxu0 0.0
    %524 = vmatpush1.xpose.msra.mxu0 0.0
    %525 = vmatprep.subr.mxu0 0.0
    %526 = vmatpush1.xpose.msra.mxu0 0.0
    %527 = vmatprep.subr.mxu0 0.0
    %528 = vmatpush1.xpose.msra.mxu0 0.0
    %529 = vmatprep.subr.mxu0 0.0
    %530 = vmatpush1.xpose.msra.mxu0 0.0
    %531 = vmatprep.mubr.f32.mxu0 0.0
    %532 = vmatmul.mubr.f32.gmra.mrb[0].mxu0 %v462
    %v533 = vpop.f32.mrb[0].mxu0
    %v534 = vadd.f32 0.0, %v533
    %v535 = vpop.f32.mrb[0].mxu0
    %536 = vdwg.mxu0
    %v537 = vld [vmem:[#allocation8] sm:$0x3]
    %v540 = vunpack.c.l.s4 1966171168
    %v541 = vunpack.c.0.s8 %v540
    %v542 = vlaneseq
    %v543 = vshrl.u32 %v542, 7
    %v544 = vsub.s32 %v541, %v543
    %v545 = vrot.slane %v537, %v544
    %v546 = vcombine.high %v545, %v545
    %v548 = vunpack.c.l.s4 1966171168
    %v549 = vunpack.c.0.s8 %v548
    %v550 = vlaneseq
    %v551 = vshrl.u32 %v550, 7
    %v552 = vsub.s32 %v549, %v551
    %v553 = vrot.slane %v545, %v552
    %v555 = vunpack.c.l.s4 1966171168
    %v556 = vunpack.c.0.s8 %v555
    %v557 = vlaneseq
    %v558 = vshrl.u32 %v557, 7
    %v559 = vsub.s32 %v556, %v558
    %v560 = vrot.slane %v546, %v559
    %vm563 = vcmp.gt.f32.partialorder %v553, 0.0
    %vm564 = vcmp.gt.f32.partialorder %v560, 0.0
    %v565 = vsel %vm563, 1, 0
    %v566 = vsel %vm564, 1, 0
    %v567 = vlaneseq
    %v568 = vshrl.u32 %v567, 7
    %v569 = vsub.s32 0, %v568
    %v570 = vrot.slane %v565, %v569
    %v571 = vlaneseq
    %v572 = vshrl.u32 %v571, 7
    %v573 = vsub.s32 0, %v572
    %v574 = vrot.slane %v566, %v573
    %vm575 = vcmp.eq.s32.totalorder %v570, 1
    %vm576 = vcmp.eq.s32.totalorder %v574, 1
    %v577 = vsel %vm575, %v458, -1e+09
    %v578 = vsel %vm576, %v534, -1e+09
    %vm579 = vcmask 64512
    %v580 = vsel %vm579, %v577, -inf
    %581 = vmax.xlane.f32.xlu0 %v580
    %v582 = vpop.xlane.xlu0 %581
    %v583 = vsel %vm579, %v578, -inf
    %584 = vmax.xlane.f32.xlu0 %v583
    %v585 = vpop.xlane.xlu0 %584
    %v586 = vsub.f32 %v577, %v582
    %v587 = vsub.f32 %v578, %v585
    %v588 = vmul.f32 %v586, 1.442695
    %v589 = vpow.pop %v588
    %v590 = vmul.f32 %v587, 1.442695
    %v591 = vpow.pop %v590
    %v592 = vsel %vm579, %v589, 0.0
    %593 = vadd.xlane.f32.xlu0 %v592
    %v594 = vpop.xlane.xlu0 %593
    %v595 = vsel %vm579, %v591, 0.0
    %596 = vadd.xlane.f32.xlu0 %v595
    %v597 = vpop.xlane.xlu0 %596
    %v598 = vrcp.pop %v594
    %v599 = vmul.f32 %v589, %v598
    %v600 = vrcp.pop %v597
    %v601 = vmul.f32 %v591, %v600
    %v602 = vld [vmem:[%s3] sm:$0xff]
    %v603 = vld [vmem:[%s3 + $0x8] sm:$0xff]
    %v604 = vld [vmem:[%s3 + $0x10] sm:$0xff]
    %v605 = vld [vmem:[%s3 + $0x18] sm:$0xff]
    %v606 = vld [vmem:[#allocation13] sm:$0xff]
    %v607 = vld [vmem:[#allocation13 + $0x8] sm:$0xff]
    %v608 = vld [vmem:[#allocation13 + $0x10] sm:$0xff]
    %v609 = vld [vmem:[#allocation13 + $0x18] sm:$0xff]
    %v610 = vld [vmem:[#allocation16] sm:$0x1]
    %v612 = vlaneseq
    %v613 = vshrl.u32 %v612, 7
    %v614 = vsub.s32 0, %v613
    %v615 = vrot.slane %v610, %v614
    %v618 = vsel %vm209, %v602, 0
    %v621 = vsel %vm209, %v603, 0
    %v624 = vsel %vm209, %v604, 0
    %v627 = vsel %vm209, %v605, 0
    %629 = vmatprep.subr.mxu0 0.0
    %630 = vmatpush1.msra.mxu0 %v606
    %631 = vmatprep.subr.mxu0 0.0
    %632 = vmatpush1.msra.mxu0 %v607
    %633 = vmatprep.subr.mxu0 0.0
    %634 = vmatpush1.msra.mxu0 %v608
    %635 = vmatprep.subr.mxu0 0.0
    %636 = vmatpush1.msra.mxu0 %v609
    %637 = vmatprep.subr.mxu0 0.0
    %638 = vmatpush1.msra.mxu0 0.0
    %639 = vmatprep.subr.mxu0 0.0
    %640 = vmatpush1.msra.mxu0 0.0
    %641 = vmatprep.subr.mxu0 0.0
    %642 = vmatpush1.msra.mxu0 0.0
    %643 = vmatprep.subr.mxu0 0.0
    %644 = vmatpush1.msra.mxu0 0.0
    %645 = vmatprep.subr.mxu0 0.0
    %646 = vmatpush1.msra.mxu0 0.0
    %647 = vmatprep.subr.mxu0 0.0
    %648 = vmatpush1.msra.mxu0 0.0
    %649 = vmatprep.subr.mxu0 0.0
    %650 = vmatpush1.msra.mxu0 0.0
    %651 = vmatprep.subr.mxu0 0.0
    %652 = vmatpush1.msra.mxu0 0.0
    %653 = vmatprep.subr.mxu0 0.0
    %654 = vmatpush1.msra.mxu0 0.0
    %655 = vmatprep.subr.mxu0 0.0
    %656 = vmatpush1.msra.mxu0 0.0
    %657 = vmatprep.subr.mxu0 0.0
    %658 = vmatpush1.msra.mxu0 0.0
    %659 = vmatprep.subr.mxu0 0.0
    %660 = vmatpush1.msra.mxu0 0.0
    %661 = vmatprep.subr.mxu0 0.0
    %662 = vmatpush1.msra.mxu0 0.0
    %663 = vmatprep.subr.mxu0 0.0
    %664 = vmatpush1.msra.mxu0 0.0
    %665 = vmatprep.subr.mxu0 0.0
    %666 = vmatpush1.msra.mxu0 0.0
    %667 = vmatprep.subr.mxu0 0.0
    %668 = vmatpush1.msra.mxu0 0.0
    %669 = vmatprep.subr.mxu0 0.0
    %670 = vmatpush1.msra.mxu0 0.0
    %671 = vmatprep.subr.mxu0 0.0
    %672 = vmatpush1.msra.mxu0 0.0
    %673 = vmatprep.subr.mxu0 0.0
    %674 = vmatpush1.msra.mxu0 0.0
    %675 = vmatprep.subr.mxu0 0.0
    %676 = vmatpush1.msra.mxu0 0.0
    %677 = vmatprep.subr.mxu0 0.0
    %678 = vmatpush1.msra.mxu0 0.0
    %679 = vmatprep.subr.mxu0 0.0
    %680 = vmatpush1.msra.mxu0 0.0
    %681 = vmatprep.subr.mxu0 0.0
    %682 = vmatpush1.msra.mxu0 0.0
    %683 = vmatprep.subr.mxu0 0.0
    %684 = vmatpush1.msra.mxu0 0.0
    %685 = vmatprep.subr.mxu0 0.0
    %686 = vmatpush1.msra.mxu0 0.0
    %687 = vmatprep.subr.mxu0 0.0
    %688 = vmatpush1.msra.mxu0 0.0
    %689 = vmatprep.subr.mxu0 0.0
    %690 = vmatpush1.msra.mxu0 0.0
    %691 = vmatprep.subr.mxu0 0.0
    %692 = vmatpush1.msra.mxu0 0.0
    %693 = vmatprep.mubr.f32.mxu0 0.0
    %694 = vmatmul.mubr.f32.gmra.mrb[0].mxu0 %v618
    %v695 = vpop.f32.mrb[0].mxu0
    %v696 = vadd.f32 %v615, %v695
    %v697 = vpop.f32.mrb[0].mxu0
    %698 = vmatprep.mubr.f32.mxu0 0.0
    %699 = vmatmul.mubr.f32.gmra.mrb[0].mxu0 %v621
    %v700 = vpop.f32.mrb[0].mxu0
    %v701 = vadd.f32 %v615, %v700
    %v702 = vpop.f32.mrb[0].mxu0
    %703 = vmatprep.mubr.f32.mxu0 0.0
    %704 = vmatmul.mubr.f32.gmra.mrb[0].mxu0 %v624
    %v705 = vpop.f32.mrb[0].mxu0
    %v706 = vadd.f32 %v615, %v705
    %v707 = vpop.f32.mrb[0].mxu0
    %708 = vmatprep.mubr.f32.mxu0 0.0
    %709 = vmatmul.mubr.f32.gmra.mrb[0].mxu0 %v627
    %v710 = vpop.f32.mrb[0].mxu0
    %v711 = vadd.f32 %v615, %v710
    %v712 = vpop.f32.mrb[0].mxu0
    %713 = vdwg.mxu0
    %714 = vrot.lane.b32.xlu0 %v283, 96
    %v715 = vpop.permute.xlu0 %714
    %v716 = vsel %vm209, %v715, 0
    %v719 = vsel %vm209, %v696, 0
    %v722 = vsel %vm209, %v701, 0
    %724 = vmatprep.subr.mxu0 0.0
    %725 = vmatpush1.xpose.msra.mxu0 %v719
    %726 = vmatprep.subr.mxu0 0.0
    %727 = vmatpush1.xpose.msra.mxu0 %v722
    %728 = vmatprep.subr.mxu0 0.0
    %729 = vmatpush1.xpose.msra.mxu0 0.0
    %730 = vmatprep.subr.mxu0 0.0
    %731 = vmatpush1.xpose.msra.mxu0 0.0
    %732 = vmatprep.subr.mxu0 0.0
    %733 = vmatpush1.xpose.msra.mxu0 0.0
    %734 = vmatprep.subr.mxu0 0.0
    %735 = vmatpush1.xpose.msra.mxu0 0.0
    %736 = vmatprep.subr.mxu0 0.0
    %737 = vmatpush1.xpose.msra.mxu0 0.0
    %738 = vmatprep.subr.mxu0 0.0
    %739 = vmatpush1.xpose.msra.mxu0 0.0
    %740 = vmatprep.subr.mxu0 0.0
    %741 = vmatpush1.xpose.msra.mxu0 0.0
    %742 = vmatprep.subr.mxu0 0.0
    %743 = vmatpush1.xpose.msra.mxu0 0.0
    %744 = vmatprep.subr.mxu0 0.0
    %745 = vmatpush1.xpose.msra.mxu0 0.0
    %746 = vmatprep.subr.mxu0 0.0
    %747 = vmatpush1.xpose.msra.mxu0 0.0
    %748 = vmatprep.subr.mxu0 0.0
    %749 = vmatpush1.xpose.msra.mxu0 0.0
    %750 = vmatprep.subr.mxu0 0.0
    %751 = vmatpush1.xpose.msra.mxu0 0.0
    %752 = vmatprep.subr.mxu0 0.0
    %753 = vmatpush1.xpose.msra.mxu0 0.0
    %754 = vmatprep.subr.mxu0 0.0
    %755 = vmatpush1.xpose.msra.mxu0 0.0
    %756 = vmatprep.subr.mxu0 0.0
    %757 = vmatpush1.xpose.msra.mxu0 0.0
    %758 = vmatprep.subr.mxu0 0.0
    %759 = vmatpush1.xpose.msra.mxu0 0.0
    %760 = vmatprep.subr.mxu0 0.0
    %761 = vmatpush1.xpose.msra.mxu0 0.0
    %762 = vmatprep.subr.mxu0 0.0
    %763 = vmatpush1.xpose.msra.mxu0 0.0
    %764 = vmatprep.subr.mxu0 0.0
    %765 = vmatpush1.xpose.msra.mxu0 0.0
    %766 = vmatprep.subr.mxu0 0.0
    %767 = vmatpush1.xpose.msra.mxu0 0.0
    %768 = vmatprep.subr.mxu0 0.0
    %769 = vmatpush1.xpose.msra.mxu0 0.0
    %770 = vmatprep.subr.mxu0 0.0
    %771 = vmatpush1.xpose.msra.mxu0 0.0
    %772 = vmatprep.subr.mxu0 0.0
    %773 = vmatpush1.xpose.msra.mxu0 0.0
    %774 = vmatprep.subr.mxu0 0.0
    %775 = vmatpush1.xpose.msra.mxu0 0.0
    %776 = vmatprep.subr.mxu0 0.0
    %777 = vmatpush1.xpose.msra.mxu0 0.0
    %778 = vmatprep.subr.mxu0 0.0
    %779 = vmatpush1.xpose.msra.mxu0 0.0
    %780 = vmatprep.subr.mxu0 0.0
    %781 = vmatpush1.xpose.msra.mxu0 0.0
    %782 = vmatprep.subr.mxu0 0.0
    %783 = vmatpush1.xpose.msra.mxu0 0.0
    %784 = vmatprep.subr.mxu0 0.0
    %785 = vmatpush1.xpose.msra.mxu0 0.0
    %786 = vmatprep.subr.mxu0 0.0
    %787 = vmatpush1.xpose.msra.mxu0 0.0
    %788 = vmatprep.mubr.f32.mxu0 0.0
    %789 = vmatmul.mubr.f32.gmra.mrb[0].mxu0 %v716
    %v790 = vpop.f32.mrb[0].mxu0
    %v791 = vadd.f32 0.0, %v790
    %v792 = vpop.f32.mrb[0].mxu0
    %793 = vdwg.mxu0
    %794 = vrot.lane.b32.xlu0 %v288, 96
    %v795 = vpop.permute.xlu0 %794
    %v796 = vsel %vm209, %v795, 0
    %v799 = vsel %vm209, %v706, 0
    %v802 = vsel %vm209, %v711, 0
    %804 = vmatprep.subr.mxu0 0.0
    %805 = vmatpush1.xpose.msra.mxu0 %v799
    %806 = vmatprep.subr.mxu0 0.0
    %807 = vmatpush1.xpose.msra.mxu0 %v802
    %808 = vmatprep.subr.mxu0 0.0
    %809 = vmatpush1.xpose.msra.mxu0 0.0
    %810 = vmatprep.subr.mxu0 0.0
    %811 = vmatpush1.xpose.msra.mxu0 0.0
    %812 = vmatprep.subr.mxu0 0.0
    %813 = vmatpush1.xpose.msra.mxu0 0.0
    %814 = vmatprep.subr.mxu0 0.0
    %815 = vmatpush1.xpose.msra.mxu0 0.0
    %816 = vmatprep.subr.mxu0 0.0
    %817 = vmatpush1.xpose.msra.mxu0 0.0
    %818 = vmatprep.subr.mxu0 0.0
    %819 = vmatpush1.xpose.msra.mxu0 0.0
    %820 = vmatprep.subr.mxu0 0.0
    %821 = vmatpush1.xpose.msra.mxu0 0.0
    %822 = vmatprep.subr.mxu0 0.0
    %823 = vmatpush1.xpose.msra.mxu0 0.0
    %824 = vmatprep.subr.mxu0 0.0
    %825 = vmatpush1.xpose.msra.mxu0 0.0
    %826 = vmatprep.subr.mxu0 0.0
    %827 = vmatpush1.xpose.msra.mxu0 0.0
    %828 = vmatprep.subr.mxu0 0.0
    %829 = vmatpush1.xpose.msra.mxu0 0.0
    %830 = vmatprep.subr.mxu0 0.0
    %831 = vmatpush1.xpose.msra.mxu0 0.0
    %832 = vmatprep.subr.mxu0 0.0
    %833 = vmatpush1.xpose.msra.mxu0 0.0
    %834 = vmatprep.subr.mxu0 0.0
    %835 = vmatpush1.xpose.msra.mxu0 0.0
    %836 = vmatprep.subr.mxu0 0.0
    %837 = vmatpush1.xpose.msra.mxu0 0.0
    %838 = vmatprep.subr.mxu0 0.0
    %839 = vmatpush1.xpose.msra.mxu0 0.0
    %840 = vmatprep.subr.mxu0 0.0
    %841 = vmatpush1.xpose.msra.mxu0 0.0
    %842 = vmatprep.subr.mxu0 0.0
    %843 = vmatpush1.xpose.msra.mxu0 0.0
    %844 = vmatprep.subr.mxu0 0.0
    %845 = vmatpush1.xpose.msra.mxu0 0.0
    %846 = vmatprep.subr.mxu0 0.0
    %847 = vmatpush1.xpose.msra.mxu0 0.0
    %848 = vmatprep.subr.mxu0 0.0
    %849 = vmatpush1.xpose.msra.mxu0 0.0
    %850 = vmatprep.subr.mxu0 0.0
    %851 = vmatpush1.xpose.msra.mxu0 0.0
    %852 = vmatprep.subr.mxu0 0.0
    %853 = vmatpush1.xpose.msra.mxu0 0.0
    %854 = vmatprep.subr.mxu0 0.0
    %855 = vmatpush1.xpose.msra.mxu0 0.0
    %856 = vmatprep.subr.mxu0 0.0
    %857 = vmatpush1.xpose.msra.mxu0 0.0
    %858 = vmatprep.subr.mxu0 0.0
    %859 = vmatpush1.xpose.msra.mxu0 0.0
    %860 = vmatprep.subr.mxu0 0.0
    %861 = vmatpush1.xpose.msra.mxu0 0.0
    %862 = vmatprep.subr.mxu0 0.0
    %863 = vmatpush1.xpose.msra.mxu0 0.0
    %864 = vmatprep.subr.mxu0 0.0
    %865 = vmatpush1.xpose.msra.mxu0 0.0
    %866 = vmatprep.subr.mxu0 0.0
    %867 = vmatpush1.xpose.msra.mxu0 0.0
    %868 = vmatprep.mubr.f32.mxu0 0.0
    %869 = vmatmul.mubr.f32.gmra.mrb[0].mxu0 %v796
    %v870 = vpop.f32.mrb[0].mxu0
    %v871 = vadd.f32 0.0, %v870
    %v872 = vpop.f32.mrb[0].mxu0
    %873 = vdwg.mxu0
    %v874 = vld [vmem:[#allocation10] sm:$0x3]
    %v877 = vunpack.c.l.s4 1966171168
    %v878 = vunpack.c.0.s8 %v877
    %v879 = vlaneseq
    %v880 = vshrl.u32 %v879, 7
    %v881 = vsub.s32 %v878, %v880
    %v882 = vrot.slane %v874, %v881
    %v883 = vcombine.high %v882, %v882
    %v885 = vunpack.c.l.s4 1966171168
    %v886 = vunpack.c.0.s8 %v885
    %v887 = vlaneseq
    %v888 = vshrl.u32 %v887, 7
    %v889 = vsub.s32 %v886, %v888
    %v890 = vrot.slane %v882, %v889
    %v892 = vunpack.c.l.s4 1966171168
    %v893 = vunpack.c.0.s8 %v892
    %v894 = vlaneseq
    %v895 = vshrl.u32 %v894, 7
    %v896 = vsub.s32 %v893, %v895
    %v897 = vrot.slane %v883, %v896
    %vm900 = vcmp.gt.f32.partialorder %v890, 0.0
    %vm901 = vcmp.gt.f32.partialorder %v897, 0.0
    %v902 = vsel %vm900, 1, 0
    %v903 = vsel %vm901, 1, 0
    %v904 = vlaneseq
    %v905 = vshrl.u32 %v904, 7
    %v906 = vsub.s32 0, %v905
    %v907 = vrot.slane %v902, %v906
    %v908 = vlaneseq
    %v909 = vshrl.u32 %v908, 7
    %v910 = vsub.s32 0, %v909
    %v911 = vrot.slane %v903, %v910
    %vm912 = vcmp.eq.s32.totalorder %v907, 1
    %vm913 = vcmp.eq.s32.totalorder %v911, 1
    %v914 = vsel %vm912, %v791, -1e+09
    %v915 = vsel %vm913, %v871, -1e+09
    %vm916 = vcmask 130048
    %v917 = vsel %vm916, %v914, -inf
    %918 = vmax.xlane.f32.xlu0 %v917
    %v919 = vpop.xlane.xlu0 %918
    %v920 = vsel %vm916, %v915, -inf
    %921 = vmax.xlane.f32.xlu0 %v920
    %v922 = vpop.xlane.xlu0 %921
    %v923 = vsub.f32 %v914, %v919
    %v924 = vsub.f32 %v915, %v922
    %v925 = vmul.f32 %v923, 1.442695
    %v926 = vpow.pop %v925
    %v927 = vmul.f32 %v924, 1.442695
    %v928 = vpow.pop %v927
    %v929 = vsel %vm916, %v926, 0.0
    %930 = vadd.xlane.f32.xlu0 %v929
    %v931 = vpop.xlane.xlu0 %930
    %v932 = vsel %vm916, %v928, 0.0
    %933 = vadd.xlane.f32.xlu0 %v932
    %v934 = vpop.xlane.xlu0 %933
    %v935 = vrcp.pop %v931
    %v936 = vmul.f32 %v926, %v935
    %v937 = vrcp.pop %v934
    %v938 = vmul.f32 %v928, %v937
    %939 = vrot.lane.b32.xlu0 %v696, 96
    %v940 = vpop.permute.xlu0 %939
    %941 = vrot.lane.b32.xlu0 %v701, 96
    %v942 = vpop.permute.xlu0 %941
    %v946 = vsel %vm916, %v936, 0
    %948 = vmatprep.subr.mxu0 0.0
    %949 = vmatpush1.msra.mxu0 %v940
    %950 = vmatprep.subr.mxu0 0.0
    %951 = vmatpush1.msra.mxu0 %v942
    %952 = vmatprep.subr.mxu0 0.0
    %953 = vmatpush1.msra.mxu0 0.0
    %954 = vmatprep.subr.mxu0 0.0
    %955 = vmatpush1.msra.mxu0 0.0
    %956 = vmatprep.subr.mxu0 0.0
    %957 = vmatpush1.msra.mxu0 0.0
    %958 = vmatprep.subr.mxu0 0.0
    %959 = vmatpush1.msra.mxu0 0.0
    %960 = vmatprep.subr.mxu0 0.0
    %961 = vmatpush1.msra.mxu0 0.0
    %962 = vmatprep.subr.mxu0 0.0
    %963 = vmatpush1.msra.mxu0 0.0
    %964 = vmatprep.subr.mxu0 0.0
    %965 = vmatpush1.msra.mxu0 0.0
    %966 = vmatprep.subr.mxu0 0.0
    %967 = vmatpush1.msra.mxu0 0.0
    %968 = vmatprep.subr.mxu0 0.0
    %969 = vmatpush1.msra.mxu0 0.0
    %970 = vmatprep.subr.mxu0 0.0
    %971 = vmatpush1.msra.mxu0 0.0
    %972 = vmatprep.subr.mxu0 0.0
    %973 = vmatpush1.msra.mxu0 0.0
    %974 = vmatprep.subr.mxu0 0.0
    %975 = vmatpush1.msra.mxu0 0.0
    %976 = vmatprep.subr.mxu0 0.0
    %977 = vmatpush1.msra.mxu0 0.0
    %978 = vmatprep.subr.mxu0 0.0
    %979 = vmatpush1.msra.mxu0 0.0
    %980 = vmatprep.subr.mxu0 0.0
    %981 = vmatpush1.msra.mxu0 0.0
    %982 = vmatprep.subr.mxu0 0.0
    %983 = vmatpush1.msra.mxu0 0.0
    %984 = vmatprep.subr.mxu0 0.0
    %985 = vmatpush1.msra.mxu0 0.0
    %986 = vmatprep.subr.mxu0 0.0
    %987 = vmatpush1.msra.mxu0 0.0
    %988 = vmatprep.subr.mxu0 0.0
    %989 = vmatpush1.msra.mxu0 0.0
    %990 = vmatprep.subr.mxu0 0.0
    %991 = vmatpush1.msra.mxu0 0.0
    %992 = vmatprep.subr.mxu0 0.0
    %993 = vmatpush1.msra.mxu0 0.0
    %994 = vmatprep.subr.mxu0 0.0
    %995 = vmatpush1.msra.mxu0 0.0
    %996 = vmatprep.subr.mxu0 0.0
    %997 = vmatpush1.msra.mxu0 0.0
    %998 = vmatprep.subr.mxu0 0.0
    %999 = vmatpush1.msra.mxu0 0.0
    %1000 = vmatprep.subr.mxu0 0.0
    %1001 = vmatpush1.msra.mxu0 0.0
    %1002 = vmatprep.subr.mxu0 0.0
    %1003 = vmatpush1.msra.mxu0 0.0
    %1004 = vmatprep.subr.mxu0 0.0
    %1005 = vmatpush1.msra.mxu0 0.0
    %1006 = vmatprep.subr.mxu0 0.0
    %1007 = vmatpush1.msra.mxu0 0.0
    %1008 = vmatprep.subr.mxu0 0.0
    %1009 = vmatpush1.msra.mxu0 0.0
    %1010 = vmatprep.subr.mxu0 0.0
    %1011 = vmatpush1.msra.mxu0 0.0
    %1012 = vmatprep.mubr.f32.mxu0 0.0
    %1013 = vmatmul.mubr.f32.gmra.mrb[0].mxu0 %v946
    %v1014 = vpop.f32.mrb[0].mxu0
    %v1015 = vadd.f32 0.0, %v1014
    %v1016 = vpop.f32.mrb[0].mxu0
    %1017 = vdwg.mxu0
    %1018 = vrot.lane.b32.xlu0 %v706, 96
    %v1019 = vpop.permute.xlu0 %1018
    %1020 = vrot.lane.b32.xlu0 %v711, 96
    %v1021 = vpop.permute.xlu0 %1020
    %v1025 = vsel %vm916, %v938, 0
    %1027 = vmatprep.subr.mxu0 0.0
    %1028 = vmatpush1.msra.mxu0 %v1019
    %1029 = vmatprep.subr.mxu0 0.0
    %1030 = vmatpush1.msra.mxu0 %v1021
    %1031 = vmatprep.subr.mxu0 0.0
    %1032 = vmatpush1.msra.mxu0 0.0
    %1033 = vmatprep.subr.mxu0 0.0
    %1034 = vmatpush1.msra.mxu0 0.0
    %1035 = vmatprep.subr.mxu0 0.0
    %1036 = vmatpush1.msra.mxu0 0.0
    %1037 = vmatprep.subr.mxu0 0.0
    %1038 = vmatpush1.msra.mxu0 0.0
    %1039 = vmatprep.subr.mxu0 0.0
    %1040 = vmatpush1.msra.mxu0 0.0
    %1041 = vmatprep.subr.mxu0 0.0
    %1042 = vmatpush1.msra.mxu0 0.0
    %1043 = vmatprep.subr.mxu0 0.0
    %1044 = vmatpush1.msra.mxu0 0.0
    %1045 = vmatprep.subr.mxu0 0.0
    %1046 = vmatpush1.msra.mxu0 0.0
    %1047 = vmatprep.subr.mxu0 0.0
    %1048 = vmatpush1.msra.mxu0 0.0
    %1049 = vmatprep.subr.mxu0 0.0
    %1050 = vmatpush1.msra.mxu0 0.0
    %1051 = vmatprep.subr.mxu0 0.0
    %1052 = vmatpush1.msra.mxu0 0.0
    %1053 = vmatprep.subr.mxu0 0.0
    %1054 = vmatpush1.msra.mxu0 0.0
    %1055 = vmatprep.subr.mxu0 0.0
    %1056 = vmatpush1.msra.mxu0 0.0
    %1057 = vmatprep.subr.mxu0 0.0
    %1058 = vmatpush1.msra.mxu0 0.0
    %1059 = vmatprep.subr.mxu0 0.0
    %1060 = vmatpush1.msra.mxu0 0.0
    %1061 = vmatprep.subr.mxu0 0.0
    %1062 = vmatpush1.msra.mxu0 0.0
    %1063 = vmatprep.subr.mxu0 0.0
    %1064 = vmatpush1.msra.mxu0 0.0
    %1065 = vmatprep.subr.mxu0 0.0
    %1066 = vmatpush1.msra.mxu0 0.0
    %1067 = vmatprep.subr.mxu0 0.0
    %1068 = vmatpush1.msra.mxu0 0.0
    %1069 = vmatprep.subr.mxu0 0.0
    %1070 = vmatpush1.msra.mxu0 0.0
    %1071 = vmatprep.subr.mxu0 0.0
    %1072 = vmatpush1.msra.mxu0 0.0
    %1073 = vmatprep.subr.mxu0 0.0
    %1074 = vmatpush1.msra.mxu0 0.0
    %1075 = vmatprep.subr.mxu0 0.0
    %1076 = vmatpush1.msra.mxu0 0.0
    %1077 = vmatprep.subr.mxu0 0.0
    %1078 = vmatpush1.msra.mxu0 0.0
    %1079 = vmatprep.subr.mxu0 0.0
    %1080 = vmatpush1.msra.mxu0 0.0
    %1081 = vmatprep.subr.mxu0 0.0
    %1082 = vmatpush1.msra.mxu0 0.0
    %1083 = vmatprep.subr.mxu0 0.0
    %1084 = vmatpush1.msra.mxu0 0.0
    %1085 = vmatprep.subr.mxu0 0.0
    %1086 = vmatpush1.msra.mxu0 0.0
    %1087 = vmatprep.subr.mxu0 0.0
    %1088 = vmatpush1.msra.mxu0 0.0
    %1089 = vmatprep.subr.mxu0 0.0
    %1090 = vmatpush1.msra.mxu0 0.0
    %1091 = vmatprep.mubr.f32.mxu0 0.0
    %1092 = vmatmul.mubr.f32.gmra.mrb[0].mxu0 %v1025
    %v1093 = vpop.f32.mrb[0].mxu0
    %v1094 = vadd.f32 0.0, %v1093
    %v1095 = vpop.f32.mrb[0].mxu0
    %1096 = vdwg.mxu0
    %1097 = vrot.lane.b32.xlu0 %v377, 96
    %v1098 = vpop.permute.xlu0 %1097
    %v1101 = vsel %vm579, %v599, 0
    %1103 = vmatprep.subr.mxu0 0.0
    %1104 = vmatpush1.msra.mxu0 %v1098
    %1105 = vmatprep.subr.mxu0 0.0
    %1106 = vmatpush1.msra.mxu0 0.0
    %1107 = vmatprep.subr.mxu0 0.0
    %1108 = vmatpush1.msra.mxu0 0.0
    %1109 = vmatprep.subr.mxu0 0.0
    %1110 = vmatpush1.msra.mxu0 0.0
    %1111 = vmatprep.subr.mxu0 0.0
    %1112 = vmatpush1.msra.mxu0 0.0
    %1113 = vmatprep.subr.mxu0 0.0
    %1114 = vmatpush1.msra.mxu0 0.0
    %1115 = vmatprep.subr.mxu0 0.0
    %1116 = vmatpush1.msra.mxu0 0.0
    %1117 = vmatprep.subr.mxu0 0.0
    %1118 = vmatpush1.msra.mxu0 0.0
    %1119 = vmatprep.subr.mxu0 0.0
    %1120 = vmatpush1.msra.mxu0 0.0
    %1121 = vmatprep.subr.mxu0 0.0
    %1122 = vmatpush1.msra.mxu0 0.0
    %1123 = vmatprep.subr.mxu0 0.0
    %1124 = vmatpush1.msra.mxu0 0.0
    %1125 = vmatprep.subr.mxu0 0.0
    %1126 = vmatpush1.msra.mxu0 0.0
    %1127 = vmatprep.subr.mxu0 0.0
    %1128 = vmatpush1.msra.mxu0 0.0
    %1129 = vmatprep.subr.mxu0 0.0
    %1130 = vmatpush1.msra.mxu0 0.0
    %1131 = vmatprep.subr.mxu0 0.0
    %1132 = vmatpush1.msra.mxu0 0.0
    %1133 = vmatprep.subr.mxu0 0.0
    %1134 = vmatpush1.msra.mxu0 0.0
    %1135 = vmatprep.subr.mxu0 0.0
    %1136 = vmatpush1.msra.mxu0 0.0
    %1137 = vmatprep.subr.mxu0 0.0
    %1138 = vmatpush1.msra.mxu0 0.0
    %1139 = vmatprep.subr.mxu0 0.0
    %1140 = vmatpush1.msra.mxu0 0.0
    %1141 = vmatprep.subr.mxu0 0.0
    %1142 = vmatpush1.msra.mxu0 0.0
    %1143 = vmatprep.subr.mxu0 0.0
    %1144 = vmatpush1.msra.mxu0 0.0
    %1145 = vmatprep.subr.mxu0 0.0
    %1146 = vmatpush1.msra.mxu0 0.0
    %1147 = vmatprep.subr.mxu0 0.0
    %1148 = vmatpush1.msra.mxu0 0.0
    %1149 = vmatprep.subr.mxu0 0.0
    %1150 = vmatpush1.msra.mxu0 0.0
    %1151 = vmatprep.subr.mxu0 0.0
    %1152 = vmatpush1.msra.mxu0 0.0
    %1153 = vmatprep.subr.mxu0 0.0
    %1154 = vmatpush1.msra.mxu0 0.0
    %1155 = vmatprep.subr.mxu0 0.0
    %1156 = vmatpush1.msra.mxu0 0.0
    %1157 = vmatprep.subr.mxu0 0.0
    %1158 = vmatpush1.msra.mxu0 0.0
    %1159 = vmatprep.subr.mxu0 0.0
    %1160 = vmatpush1.msra.mxu0 0.0
    %1161 = vmatprep.subr.mxu0 0.0
    %1162 = vmatpush1.msra.mxu0 0.0
    %1163 = vmatprep.subr.mxu0 0.0
    %1164 = vmatpush1.msra.mxu0 0.0
    %1165 = vmatprep.subr.mxu0 0.0
    %1166 = vmatpush1.msra.mxu0 0.0
    %1167 = vmatprep.mubr.f32.mxu0 0.0
    %1168 = vmatmul.mubr.f32.gmra.mrb[0].mxu0 %v1101
    %v1169 = vpop.f32.mrb[0].mxu0
    %v1170 = vadd.f32 %v1015, %v1169
    %v1171 = vpop.f32.mrb[0].mxu0
    %1172 = vdwg.mxu0
    %1173 = vrot.lane.b32.xlu0 %v382, 96
    %v1174 = vpop.permute.xlu0 %1173
    %v1177 = vsel %vm579, %v601, 0
    %1179 = vmatprep.subr.mxu0 0.0
    %1180 = vmatpush1.msra.mxu0 %v1174
    %1181 = vmatprep.subr.mxu0 0.0
    %1182 = vmatpush1.msra.mxu0 0.0
    %1183 = vmatprep.subr.mxu0 0.0
    %1184 = vmatpush1.msra.mxu0 0.0
    %1185 = vmatprep.subr.mxu0 0.0
    %1186 = vmatpush1.msra.mxu0 0.0
    %1187 = vmatprep.subr.mxu0 0.0
    %1188 = vmatpush1.msra.mxu0 0.0
    %1189 = vmatprep.subr.mxu0 0.0
    %1190 = vmatpush1.msra.mxu0 0.0
    %1191 = vmatprep.subr.mxu0 0.0
    %1192 = vmatpush1.msra.mxu0 0.0
    %1193 = vmatprep.subr.mxu0 0.0
    %1194 = vmatpush1.msra.mxu0 0.0
    %1195 = vmatprep.subr.mxu0 0.0
    %1196 = vmatpush1.msra.mxu0 0.0
    %1197 = vmatprep.subr.mxu0 0.0
    %1198 = vmatpush1.msra.mxu0 0.0
    %1199 = vmatprep.subr.mxu0 0.0
    %1200 = vmatpush1.msra.mxu0 0.0
    %1201 = vmatprep.subr.mxu0 0.0
    %1202 = vmatpush1.msra.mxu0 0.0
    %1203 = vmatprep.subr.mxu0 0.0
    %1204 = vmatpush1.msra.mxu0 0.0
    %1205 = vmatprep.subr.mxu0 0.0
    %1206 = vmatpush1.msra.mxu0 0.0
    %1207 = vmatprep.subr.mxu0 0.0
    %1208 = vmatpush1.msra.mxu0 0.0
    %1209 = vmatprep.subr.mxu0 0.0
    %1210 = vmatpush1.msra.mxu0 0.0
    %1211 = vmatprep.subr.mxu0 0.0
    %1212 = vmatpush1.msra.mxu0 0.0
    %1213 = vmatprep.subr.mxu0 0.0
    %1214 = vmatpush1.msra.mxu0 0.0
    %1215 = vmatprep.subr.mxu0 0.0
    %1216 = vmatpush1.msra.mxu0 0.0
    %1217 = vmatprep.subr.mxu0 0.0
    %1218 = vmatpush1.msra.mxu0 0.0
    %1219 = vmatprep.subr.mxu0 0.0
    %1220 = vmatpush1.msra.mxu0 0.0
    %1221 = vmatprep.subr.mxu0 0.0
    %1222 = vmatpush1.msra.mxu0 0.0
    %1223 = vmatprep.subr.mxu0 0.0
    %1224 = vmatpush1.msra.mxu0 0.0
    %1225 = vmatprep.subr.mxu0 0.0
    %1226 = vmatpush1.msra.mxu0 0.0
    %1227 = vmatprep.subr.mxu0 0.0
    %1228 = vmatpush1.msra.mxu0 0.0
    %1229 = vmatprep.subr.mxu0 0.0
    %1230 = vmatpush1.msra.mxu0 0.0
    %1231 = vmatprep.subr.mxu0 0.0
    %1232 = vmatpush1.msra.mxu0 0.0
    %1233 = vmatprep.subr.mxu0 0.0
    %1234 = vmatpush1.msra.mxu0 0.0
    %1235 = vmatprep.subr.mxu0 0.0
    %1236 = vmatpush1.msra.mxu0 0.0
    %1237 = vmatprep.subr.mxu0 0.0
    %1238 = vmatpush1.msra.mxu0 0.0
    %1239 = vmatprep.subr.mxu0 0.0
    %1240 = vmatpush1.msra.mxu0 0.0
    %1241 = vmatprep.subr.mxu0 0.0
    %1242 = vmatpush1.msra.mxu0 0.0
    %1243 = vmatprep.mubr.f32.mxu0 0.0
    %1244 = vmatmul.mubr.f32.gmra.mrb[0].mxu0 %v1177
    %v1245 = vpop.f32.mrb[0].mxu0
    %v1246 = vadd.f32 %v1094, %v1245
    %v1247 = vpop.f32.mrb[0].mxu0
    %1248 = vdwg.mxu0
    %v1249 = vlaneseq
    %v1250 = vshrl.u32 %v1249, 7
    %v1251 = vsub.s32 0, %v1250
    %v1252 = vrot.slane %v197, %v1251
    %1254 = vbcast.lane.b32.xlu0 %v1252, 256
    %v1255 = vpop.permute.xlu0 %1254
    %v1256 = vlaneseq
    %v1257 = vshrl.u32 %v1256, 7
    %v1258 = vsub.s32 1, %v1257
    %v1259 = vrot.slane %v197, %v1258
    %1261 = vbcast.lane.b32.xlu0 %v1259, 256
    %v1262 = vpop.permute.xlu0 %1261
    %v1263 = vmul.f32 %v1170, %v1255
    %v1264 = vmul.f32 %v1246, %v1262
    %v1265 = vadd.f32 %v195, %v1263
    %v1266 = vadd.f32 %v196, %v1264
    %v1267 = vsel %vm209, %v1265, 0.0
    %1268 = vadd.xlane.f32.xlu0 %v1267
    %v1269 = vpop.xlane.xlu0 %1268
    %v1270 = vsel %vm209, %v1266, 0.0
    %1271 = vadd.xlane.f32.xlu0 %v1270
    %v1272 = vpop.xlane.xlu0 %1271
    %v1273 = vrcp.pop 32.0
    %v1274 = vmul.f32 %v1269, %v1273
    %v1275 = vmul.f32 %v1272, %v1273
    %v1276 = vsub.f32 %v1265, %v1274
    %v1277 = vsub.f32 %v1266, %v1275
    %v1278 = vmul.f32 %v1276, %v1276
    %v1279 = vmul.f32 %v1277, %v1277
    %v1280 = vsel %vm209, %v1278, 0.0
    %1281 = vadd.xlane.f32.xlu0 %v1280
    %v1282 = vpop.xlane.xlu0 %1281
    %v1283 = vsel %vm209, %v1279, 0.0
    %1284 = vadd.xlane.f32.xlu0 %v1283
    %v1285 = vpop.xlane.xlu0 %1284
    %v1286 = vmul.f32 %v1282, %v1273
    %v1287 = vmul.f32 %v1285, %v1273
    %v1288 = vadd.f32 %v1286, 1e-05
    %v1289 = vadd.f32 %v1287, 1e-05
    %v1290 = vrsqrt.pop %v1288
    %v1291 = vrsqrt.pop %v1289
    %v1292 = vmul.f32 %v1276, %v1290
    %v1293 = vmul.f32 %v1277, %v1291
    %v1294 = vld [vmem:[#allocation17] sm:$0x1]
    %v1296 = vlaneseq
    %v1297 = vshrl.u32 %v1296, 7
    %v1298 = vsub.s32 0, %v1297
    %v1299 = vrot.slane %v1294, %v1298
    %v1301 = vmul.f32 %v1292, %v1299
    %v1302 = vmul.f32 %v1293, %v1299
    %v1303 = vld [vmem:[#allocation19] sm:$0x1]
    %v1305 = vlaneseq
    %v1306 = vshrl.u32 %v1305, 7
    %v1307 = vsub.s32 0, %v1306
    %v1308 = vrot.slane %v1303, %v1307
    %v1310 = vadd.f32 %v1301, %v1308
    %v1311 = vadd.f32 %v1302, %v1308
    %v1312 = vld [vmem:[%s14] sm:$0xff]
    %v1313 = vld [vmem:[%s14 + $0x8] sm:$0xff]
    %v1314 = vld [vmem:[%s14 + $0x10] sm:$0xff]
    %v1315 = vld [vmem:[%s14 + $0x18] sm:$0xff]
    %v1316 = vld [vmem:[%s15] sm:$0x1]
    %v1318 = vlaneseq
    %v1319 = vshrl.u32 %v1318, 7
    %v1320 = vsub.s32 0, %v1319
    %v1321 = vrot.slane %v1316, %v1320
    %v1324 = vsel %vm209, %v1310, 0
    %v1327 = vsel %vm209, %v1311, 0
    %1329 = vmatprep.subr.mxu0 0.0
    %1330 = vmatpush1.msra.mxu0 %v1312
    %1331 = vmatprep.subr.mxu0 0.0
    %1332 = vmatpush1.msra.mxu0 %v1313
    %1333 = vmatprep.subr.mxu0 0.0
    %1334 = vmatpush1.msra.mxu0 %v1314
    %1335 = vmatprep.subr.mxu0 0.0
    %1336 = vmatpush1.msra.mxu0 %v1315
    %1337 = vmatprep.subr.mxu0 0.0
    %1338 = vmatpush1.msra.mxu0 0.0
    %1339 = vmatprep.subr.mxu0 0.0
    %1340 = vmatpush1.msra.mxu0 0.0
    %1341 = vmatprep.subr.mxu0 0.0
    %1342 = vmatpush1.msra.mxu0 0.0
    %1343 = vmatprep.subr.mxu0 0.0
    %1344 = vmatpush1.msra.mxu0 0.0
    %1345 = vmatprep.subr.mxu0 0.0
    %1346 = vmatpush1.msra.mxu0 0.0
    %1347 = vmatprep.subr.mxu0 0.0
    %1348 = vmatpush1.msra.mxu0 0.0
    %1349 = vmatprep.subr.mxu0 0.0
    %1350 = vmatpush1.msra.mxu0 0.0
    %1351 = vmatprep.subr.mxu0 0.0
    %1352 = vmatpush1.msra.mxu0 0.0
    %1353 = vmatprep.subr.mxu0 0.0
    %1354 = vmatpush1.msra.mxu0 0.0
    %1355 = vmatprep.subr.mxu0 0.0
    %1356 = vmatpush1.msra.mxu0 0.0
    %1357 = vmatprep.subr.mxu0 0.0
    %1358 = vmatpush1.msra.mxu0 0.0
    %1359 = vmatprep.subr.mxu0 0.0
    %1360 = vmatpush1.msra.mxu0 0.0
    %1361 = vmatprep.subr.mxu0 0.0
    %1362 = vmatpush1.msra.mxu0 0.0
    %1363 = vmatprep.subr.mxu0 0.0
    %1364 = vmatpush1.msra.mxu0 0.0
    %1365 = vmatprep.subr.mxu0 0.0
    %1366 = vmatpush1.msra.mxu0 0.0
    %1367 = vmatprep.subr.mxu0 0.0
    %1368 = vmatpush1.msra.mxu0 0.0
    %1369 = vmatprep.subr.mxu0 0.0
    %1370 = vmatpush1.msra.mxu0 0.0
    %1371 = vmatprep.subr.mxu0 0.0
    %1372 = vmatpush1.msra.mxu0 0.0
    %1373 = vmatprep.subr.mxu0 0.0
    %1374 = vmatpush1.msra.mxu0 0.0
    %1375 = vmatprep.subr.mxu0 0.0
    %1376 = vmatpush1.msra.mxu0 0.0
    %1377 = vmatprep.subr.mxu0 0.0
    %1378 = vmatpush1.msra.mxu0 0.0
    %1379 = vmatprep.subr.mxu0 0.0
    %1380 = vmatpush1.msra.mxu0 0.0
    %1381 = vmatprep.subr.mxu0 0.0
    %1382 = vmatpush1.msra.mxu0 0.0
    %1383 = vmatprep.subr.mxu0 0.0
    %1384 = vmatpush1.msra.mxu0 0.0
    %1385 = vmatprep.subr.mxu0 0.0
    %1386 = vmatpush1.msra.mxu0 0.0
    %1387 = vmatprep.subr.mxu0 0.0
    %1388 = vmatpush1.msra.mxu0 0.0
    %1389 = vmatprep.subr.mxu0 0.0
    %1390 = vmatpush1.msra.mxu0 0.0
    %1391 = vmatprep.subr.mxu0 0.0
    %1392 = vmatpush1.msra.mxu0 0.0
    %1393 = vmatprep.mubr.f32.mxu0 0.0
    %1394 = vmatmul.mubr.f32.gmra.mrb[0].mxu0 %v1324
    %v1395 = vpop.f32.mrb[0].mxu0
    %v1396 = vadd.f32 %v1321, %v1395
    %v1397 = vpop.f32.mrb[0].mxu0
    %1398 = vmatprep.mubr.f32.mxu0 0.0
    %1399 = vmatmul.mubr.f32.gmra.mrb[0].mxu0 %v1327
    %v1400 = vpop.f32.mrb[0].mxu0
    %v1401 = vadd.f32 %v1321, %v1400
    %v1402 = vpop.f32.mrb[0].mxu0
    %1403 = vdwg.mxu0
    %v1404 = vtanh.pop %v1396
    %v1405 = vtanh.pop %v1401
    %v1406 = vld [vmem:[%s16] sm:$0xff]
    %v1407 = vld [vmem:[%s16 + $0x8] sm:$0xff]
    %v1408 = vld [vmem:[%s16 + $0x10] sm:$0xff]
    %v1409 = vld [vmem:[%s16 + $0x18] sm:$0xff]
    %v1410 = vld [vmem:[%s17] sm:$0x1]
    %v1412 = vlaneseq
    %v1413 = vshrl.u32 %v1412, 7
    %v1414 = vsub.s32 0, %v1413
    %v1415 = vrot.slane %v1410, %v1414
    %v1418 = vsel %vm209, %v1404, 0
    %v1421 = vsel %vm209, %v1405, 0
    %1423 = vmatprep.subr.mxu0 0.0
    %1424 = vmatpush1.msra.mxu0 %v1406
    %1425 = vmatprep.subr.mxu0 0.0
    %1426 = vmatpush1.msra.mxu0 %v1407
    %1427 = vmatprep.subr.mxu0 0.0
    %1428 = vmatpush1.msra.mxu0 %v1408
    %1429 = vmatprep.subr.mxu0 0.0
    %1430 = vmatpush1.msra.mxu0 %v1409
    %1431 = vmatprep.subr.mxu0 0.0
    %1432 = vmatpush1.msra.mxu0 0.0
    %1433 = vmatprep.subr.mxu0 0.0
    %1434 = vmatpush1.msra.mxu0 0.0
    %1435 = vmatprep.subr.mxu0 0.0
    %1436 = vmatpush1.msra.mxu0 0.0
    %1437 = vmatprep.subr.mxu0 0.0
    %1438 = vmatpush1.msra.mxu0 0.0
    %1439 = vmatprep.subr.mxu0 0.0
    %1440 = vmatpush1.msra.mxu0 0.0
    %1441 = vmatprep.subr.mxu0 0.0
    %1442 = vmatpush1.msra.mxu0 0.0
    %1443 = vmatprep.subr.mxu0 0.0
    %1444 = vmatpush1.msra.mxu0 0.0
    %1445 = vmatprep.subr.mxu0 0.0
    %1446 = vmatpush1.msra.mxu0 0.0
    %1447 = vmatprep.subr.mxu0 0.0
    %1448 = vmatpush1.msra.mxu0 0.0
    %1449 = vmatprep.subr.mxu0 0.0
    %1450 = vmatpush1.msra.mxu0 0.0
    %1451 = vmatprep.subr.mxu0 0.0
    %1452 = vmatpush1.msra.mxu0 0.0
    %1453 = vmatprep.subr.mxu0 0.0
    %1454 = vmatpush1.msra.mxu0 0.0
    %1455 = vmatprep.subr.mxu0 0.0
    %1456 = vmatpush1.msra.mxu0 0.0
    %1457 = vmatprep.subr.mxu0 0.0
    %1458 = vmatpush1.msra.mxu0 0.0
    %1459 = vmatprep.subr.mxu0 0.0
    %1460 = vmatpush1.msra.mxu0 0.0
    %1461 = vmatprep.subr.mxu0 0.0
    %1462 = vmatpush1.msra.mxu0 0.0
    %1463 = vmatprep.subr.mxu0 0.0
    %1464 = vmatpush1.msra.mxu0 0.0
    %1465 = vmatprep.subr.mxu0 0.0
    %1466 = vmatpush1.msra.mxu0 0.0
    %1467 = vmatprep.subr.mxu0 0.0
    %1468 = vmatpush1.msra.mxu0 0.0
    %1469 = vmatprep.subr.mxu0 0.0
    %1470 = vmatpush1.msra.mxu0 0.0
    %1471 = vmatprep.subr.mxu0 0.0
    %1472 = vmatpush1.msra.mxu0 0.0
    %1473 = vmatprep.subr.mxu0 0.0
    %1474 = vmatpush1.msra.mxu0 0.0
    %1475 = vmatprep.subr.mxu0 0.0
    %1476 = vmatpush1.msra.mxu0 0.0
    %1477 = vmatprep.subr.mxu0 0.0
    %1478 = vmatpush1.msra.mxu0 0.0
    %1479 = vmatprep.subr.mxu0 0.0
    %1480 = vmatpush1.msra.mxu0 0.0
    %1481 = vmatprep.subr.mxu0 0.0
    %1482 = vmatpush1.msra.mxu0 0.0
    %1483 = vmatprep.subr.mxu0 0.0
    %1484 = vmatpush1.msra.mxu0 0.0
    %1485 = vmatprep.subr.mxu0 0.0
    %1486 = vmatpush1.msra.mxu0 0.0
    %1487 = vmatprep.mubr.f32.mxu0 0.0
    %1488 = vmatmul.mubr.f32.gmra.mrb[0].mxu0 %v1418
    %v1489 = vpop.f32.mrb[0].mxu0
    %v1490 = vadd.f32 %v1415, %v1489
    %v1491 = vpop.f32.mrb[0].mxu0
    %1492 = vmatprep.mubr.f32.mxu0 0.0
    %1493 = vmatmul.mubr.f32.gmra.mrb[0].mxu0 %v1421
    %v1494 = vpop.f32.mrb[0].mxu0
    %v1495 = vadd.f32 %v1415, %v1494
    %v1496 = vpop.f32.mrb[0].mxu0
    %1497 = vdwg.mxu0
    %1500 = vrot.lane.b32.xlu0 %v577, 16
    %v1501 = vpop.permute.xlu0 %1500
    %1502 = vrot.lane.b32.xlu0 %v578, 16
    %v1503 = vpop.permute.xlu0 %1502
    %1508 = vrot.lane.b32.xlu0 %v914, 24
    %v1509 = vpop.permute.xlu0 %1508
    %1510 = vrot.lane.b32.xlu0 %v915, 24
    %v1511 = vpop.permute.xlu0 %1510
    %v1514 = vsel %vm916, %v1490, %v1501
    %v1515 = vsel %vm916, %v1495, %v1503
    %vm1516 = vcmask 195584
    %v1517 = vsel %vm1516, %v1514, %v1509
    %v1518 = vsel %vm1516, %v1515, %v1511
    %vm1519 = vcmask 326656
    %1520 = vst.msk [vmem:[#allocation20] sm:$0xff] %vm1519, %v1517
    %1521 = vst.msk [vmem:[#allocation20 + $0x8] sm:$0xff] %vm1519, %v1518
    // Predicated region
    $region118: #{tpu_custom_call.1} parent=1 // pred_check
      _
    $region119: #{tpu_custom_call.1} parent=1 // pred_check_branch
      %1523 = sbr.rel (0) target = $region121
    $region120: #{tpu_custom_call.1} parent=1 // pred_region
      %s1525 = ssub.s32 256, 256
      %1526 = vsyncadd [#allocation4], %s1525
      %s1527 = sshll.u32 [#allocation20], 4
      %s1528 = int_to_ptr.vmem [resolvable:$true] %s1527
      %1533 = dma.vmem_to_hbm [thread:$0]  %s1528, 256, %s18, [#allocation4], 128, 128, 8
    $region121: #{tpu_custom_call.1} parent=1 // pred_fallthru
      _
    // Predicated region
    $region122: #{tpu_custom_call.1} parent=1 // pred_check
      _
    $region123: #{tpu_custom_call.1} parent=1 // pred_check_branch
      %1535 = sbr.rel (0) target = $region125
    $region124: #{tpu_custom_call.1} parent=1 // pred_region
      %1536 = dma.done [#allocation4], 256
    $region125: #{tpu_custom_call.1} parent=1 // pred_fallthru
      _
    %1537 = vsyncpa [#allocation3], 1
    %1538 = vsyncpa [#allocation6], 1
    %1539 = vsyncpa [#allocation9], 1
    %1540 = vsyncpa [#allocation12], 1
    %1541 = vsyncpa [#allocation15], 1
    %1542 = vsyncpa [#allocation18], 1
    %1543 = vsyncpa [#allocation4], 1

</llo_original>
